<compile_context>
chip_gen: v7x
topology: tpu7x:2x2x1
jax: 0.10.0
libtpu: 0.0.40
codegen_flags: <defaults>
</compile_context>

<pallas_src>
import jax
import jax.numpy as jnp
from jax.experimental import pallas as pl
from jax.experimental.pallas import tpu as pltpu

# ----------------------------- configuration --------------------------------
NUM_BLOCKS = 2
INPUT_DIM = 32                    # module arg `input_dim`
IN_FEATURES = INPUT_DIM + 128     # module's first Linear is Linear(input_dim+128, H)
HIDDEN_DIM = 128
OUT_DIM = 32
OUT_PAD = 128                     # lane-dense (multiple-of-128) padded output width
USE_LAYER_NORM = True
DROPOUT_RATE = None               # None -> no dropout (matches module with rate=None / eval)
LN_EPS = 1e-5

BATCH = 32                        # small demo batch; wrapper handles any batch


def _choose_tile_b(batch):
    """Pick a batch tile: a multiple of 8 (sublane friendly, bf16 packs in
    16-row pairs), as large as sensible for the MXU, and >=2 grid steps when
    possible so the "parallel" grid axis can feed both v7x TensorCores."""
    for t in (256, 128, 64, 32, 16, 8):
        if batch % t == 0 and batch // t >= 2:
            return t
    for t in (256, 128, 64, 32, 16, 8):
        if batch % t == 0:
            return t
    return batch                  # block == full extent: always legal


# ------------------------------- kernel --------------------------------------
def mlp_resnet_kernel(x_ref, fcw_ref, fcb_ref, lng_ref, lnb_ref,
                      w1_ref, b1_ref, w2_ref, b2_ref,
                      outw_ref, outb_ref, o_ref):
    # x_ref: [TILE_B, IN_FEATURES] bf16; matmul weights bf16; biases / LN f32.
    x = x_ref[...]

    # input projection: Linear(input_dim + 128, hidden_dim); f32 accumulation.
    h = jnp.dot(x, fcw_ref[...], preferred_element_type=jnp.float32) + fcb_ref[...]

    # residual MLP blocks (unrolled; NUM_BLOCKS is small and static)
    for i in range(NUM_BLOCKS):
        residual = h
        z = h
        # TODO(synk): stochastic dropout (pltpu.prng_seed / prng_random_bits)
        # would go here if dropout_rate > 0 and the module ran in training mode.
        if USE_LAYER_NORM:
            mean = jnp.mean(z, axis=-1, keepdims=True)
            var = jnp.mean((z - mean) * (z - mean), axis=-1, keepdims=True)
            z = (z - mean) * jax.lax.rsqrt(var + LN_EPS)
            z = z * lng_ref[i] + lnb_ref[i]
        # fc1: H -> 4H (bf16 operands, f32 accumulate), then relu.
        z = jnp.dot(z.astype(jnp.bfloat16), w1_ref[i],
                    preferred_element_type=jnp.float32) + b1_ref[i]
        z = jnp.maximum(z, 0.0)
        # fc2: 4H -> H.
        z = jnp.dot(z.astype(jnp.bfloat16), w2_ref[i],
                    preferred_element_type=jnp.float32) + b2_ref[i]
        # residual.shape == z.shape always in this config, so the block's
        # `residual` Linear is never applied (dead parameter in the module).
        h = residual + z

    # head: activation, then out_fc padded to OUT_PAD lanes for dense stores.
    h = jnp.maximum(h, 0.0)
    out = jnp.dot(h.astype(jnp.bfloat16), outw_ref[...],
                  preferred_element_type=jnp.float32) + outb_ref[...]
    o_ref[...] = out.astype(o_ref.dtype)


# ------------------------------- wrapper --------------------------------------
@jax.jit
def mlp_resnet_forward(x, params):
    B = x.shape[0]
    tile_b = _choose_tile_b(B)
    assert B % tile_b == 0
    grid = (B // tile_b,)

    # Feed activations / weights to the MXU in bf16; biases stay f32.
    x_bf = x.astype(jnp.bfloat16)
    # Pad out_fc to a lane-dense 128-wide output; the extra columns are zero
    # and are sliced off after the kernel (avoids masked vst.msk stores).
    out_w = jnp.pad(params["out_w"], ((0, 0), (0, OUT_PAD - OUT_DIM)))
    out_b = jnp.pad(params["out_b"], ((0, 0), (0, OUT_PAD - OUT_DIM)))

    # Grid-invariant operands: full-block specs with constant index maps, so
    # they stay resident in VMEM across grid steps. Total weight footprint is
    # well under 1 MiB in bf16, so default double buffering is harmless even
    # on v7x's 64 MiB VMEM.
    full2d = lambda shape: pl.BlockSpec(shape, lambda i: (0, 0))
    full3d = lambda shape: pl.BlockSpec(shape, lambda i: (0, 0, 0))

    in_specs = [
        pl.BlockSpec((tile_b, IN_FEATURES), lambda i: (i, 0)),          # x tile
        full2d((IN_FEATURES, HIDDEN_DIM)),                              # fc.W
        full2d((1, HIDDEN_DIM)),                                        # fc.b
        full2d((NUM_BLOCKS, HIDDEN_DIM)),                               # ln gamma
        full2d((NUM_BLOCKS, HIDDEN_DIM)),                               # ln beta
        full3d((NUM_BLOCKS, HIDDEN_DIM, 4 * HIDDEN_DIM)),               # fc1.W
        full2d((NUM_BLOCKS, 4 * HIDDEN_DIM)),                           # fc1.b
        full3d((NUM_BLOCKS, 4 * HIDDEN_DIM, HIDDEN_DIM)),               # fc2.W
        full2d((NUM_BLOCKS, HIDDEN_DIM)),                               # fc2.b
        full2d((HIDDEN_DIM, OUT_PAD)),                                  # out_fc.W (padded)
        full2d((1, OUT_PAD)),                                           # out_fc.b (padded)
    ]
    out_spec = pl.BlockSpec((tile_b, OUT_PAD), lambda i: (i, 0))

    out_padded = pl.pallas_call(
        mlp_resnet_kernel,
        out_shape=jax.ShapeDtypeStruct((B, OUT_PAD), jnp.float32),
        grid_spec=pltpu.PrefetchScalarGridSpec(
            num_scalar_prefetch=0,
            grid=grid,
            in_specs=in_specs,
            out_specs=out_spec,
        ),
        compiler_params=pltpu.CompilerParams(
            dimension_semantics=("parallel",)),
    )(x_bf,
      params["fc_w"], params["fc_b"],
      params["ln_g"], params["ln_b"],
      params["w1"], params["b1"],
      params["w2"], params["b2"],
      out_w, out_b)
    return out_padded[:, :OUT_DIM]


# --------------------------- reference (plain JAX) ----------------------------
def mlp_resnet_reference(x, params):
    bf = jnp.bfloat16
    h = jnp.dot(x.astype(bf), params["fc_w"],
                preferred_element_type=jnp.float32) + params["fc_b"]
    for i in range(NUM_BLOCKS):
        residual = h
        z = h
        if USE_LAYER_NORM:
            mean = jnp.mean(z, axis=-1, keepdims=True)
            var = jnp.mean((z - mean) ** 2, axis=-1, keepdims=True)
            z = (z - mean) * jax.lax.rsqrt(var + LN_EPS)
            z = z * params["ln_g"][i] + params["ln_b"][i]
        z = jnp.dot(z.astype(bf), params["w1"][i],
                    preferred_element_type=jnp.float32) + params["b1"][i]
        z = jnp.maximum(z, 0.0)
        z = jnp.dot(z.astype(bf), params["w2"][i],
                    preferred_element_type=jnp.float32) + params["b2"][i]
        h = residual + z
    h = jnp.maximum(h, 0.0)
    return jnp.dot(h.astype(bf), params["out_w"],
                   preferred_element_type=jnp.float32) + params["out_b"]


# ------------------------------ param init ------------------------------------
def init_params(key):
    ks = jax.random.split(key, 8)
    scale_in = 1.0 / jnp.sqrt(IN_FEATURES)
    scale_h = 1.0 / jnp.sqrt(HIDDEN_DIM)
    scale_4h = 1.0 / jnp.sqrt(4 * HIDDEN_DIM)
    bf = jnp.bfloat16
    return {
        # matmul weights stored in bf16 (halves weight DMA, native MXU dtype)
        "fc_w": (jax.random.normal(ks[0], (IN_FEATURES, HIDDEN_DIM), jnp.float32)
                 * scale_in).astype(bf),
        "fc_b": jax.random.normal(ks[1], (1, HIDDEN_DIM), jnp.float32) * 0.01,
        "ln_g": jnp.ones((NUM_BLOCKS, HIDDEN_DIM), jnp.float32),
        "ln_b": jnp.zeros((NUM_BLOCKS, HIDDEN_DIM), jnp.float32),
        "w1": (jax.random.normal(ks[2], (NUM_BLOCKS, HIDDEN_DIM, 4 * HIDDEN_DIM),
                                 jnp.float32) * scale_h).astype(bf),
        "b1": jax.random.normal(ks[3], (NUM_BLOCKS, 4 * HIDDEN_DIM), jnp.float32) * 0.01,
        "w2": (jax.random.normal(ks[4], (NUM_BLOCKS, 4 * HIDDEN_DIM, HIDDEN_DIM),
                                 jnp.float32) * scale_4h).astype(bf),
        "b2": jax.random.normal(ks[5], (NUM_BLOCKS, HIDDEN_DIM), jnp.float32) * 0.01,
        "out_w": (jax.random.normal(ks[6], (HIDDEN_DIM, OUT_DIM), jnp.float32)
                  * scale_h).astype(bf),
        "out_b": jax.random.normal(ks[7], (1, OUT_DIM), jnp.float32) * 0.01,
    }


if __name__ == "__main__":
    key = jax.random.PRNGKey(0)
    k_x, k_p = jax.random.split(key)
    x = jax.random.normal(k_x, (BATCH, IN_FEATURES), jnp.float32)
    params = init_params(k_p)

    out = mlp_resnet_forward(x, params)
    out = jax.block_until_ready(out)

    ref = mlp_resnet_reference(x, params)
    assert out.shape == (BATCH, OUT_DIM)
    max_err = jnp.max(jnp.abs(out - ref))
    assert jnp.allclose(out, ref, atol=1e-2, rtol=1e-2), f"max abs err {max_err}"

    print("KERNEL_OK")
</pallas_src>

<mosaic_0001>
module attributes {stable_mosaic.version = 11 : i64} {
  func.func @mlp_resnet_kernel(%arg0: i32, %arg1: memref<16x160xbf16, #tpu.memory_space<vmem>>, %arg2: memref<160x128xbf16, #tpu.memory_space<vmem>>, %arg3: memref<1x128xf32, #tpu.memory_space<vmem>>, %arg4: memref<2x128xf32, #tpu.memory_space<vmem>>, %arg5: memref<2x128xf32, #tpu.memory_space<vmem>>, %arg6: memref<2x128x512xbf16, #tpu.memory_space<vmem>>, %arg7: memref<2x512xf32, #tpu.memory_space<vmem>>, %arg8: memref<2x512x128xbf16, #tpu.memory_space<vmem>>, %arg9: memref<2x128xf32, #tpu.memory_space<vmem>>, %arg10: memref<128x128xbf16, #tpu.memory_space<vmem>>, %arg11: memref<1x128xf32, #tpu.memory_space<vmem>>, %arg12: memref<16x128xf32, #tpu.memory_space<vmem>>) attributes {dimension_semantics = [#tpu.dimension_semantics<parallel>], iteration_bounds = array<i64: 2>, scalar_prefetch = 0 : i64, scratch_operands = 0 : i64, tpu.core_type = #tpu.core_type<tc>, window_params = [{transform_indices = @transform_0, window_bounds = array<i64: 16, 160>}, {pipeline_mode = #tpu.pipeline_mode<synchronous>, transform_indices = @transform_1, window_bounds = array<i64: 160, 128>}, {pipeline_mode = #tpu.pipeline_mode<synchronous>, transform_indices = @transform_2, window_bounds = array<i64: 1, 128>}, {pipeline_mode = #tpu.pipeline_mode<synchronous>, transform_indices = @transform_3, window_bounds = array<i64: 2, 128>}, {pipeline_mode = #tpu.pipeline_mode<synchronous>, transform_indices = @transform_4, window_bounds = array<i64: 2, 128>}, {pipeline_mode = #tpu.pipeline_mode<synchronous>, transform_indices = @transform_5, window_bounds = array<i64: 2, 128, 512>}, {pipeline_mode = #tpu.pipeline_mode<synchronous>, transform_indices = @transform_6, window_bounds = array<i64: 2, 512>}, {pipeline_mode = #tpu.pipeline_mode<synchronous>, transform_indices = @transform_7, window_bounds = array<i64: 2, 512, 128>}, {pipeline_mode = #tpu.pipeline_mode<synchronous>, transform_indices = @transform_8, window_bounds = array<i64: 2, 128>}, {pipeline_mode = #tpu.pipeline_mode<synchronous>, transform_indices = @transform_9, window_bounds = array<i64: 128, 128>}, {pipeline_mode = #tpu.pipeline_mode<synchronous>, transform_indices = @transform_10, window_bounds = array<i64: 1, 128>}, {transform_indices = @transform_11, window_bounds = array<i64: 16, 128>}]} {
    %c0 = arith.constant 0 : index
    %c0_0 = arith.constant 0 : index
    %0 = vector.load %arg1[%c0, %c0_0] : memref<16x160xbf16, #tpu.memory_space<vmem>>, vector<16x160xbf16>
    %c0_1 = arith.constant 0 : index
    %c0_2 = arith.constant 0 : index
    %1 = vector.load %arg2[%c0_1, %c0_2] : memref<160x128xbf16, #tpu.memory_space<vmem>>, vector<160x128xbf16>
    %cst = arith.constant dense<0.000000e+00> : vector<16x128xf32>
    %2 = tpu.matmul %0, %1, %cst {dimension_numbers = #tpu.dot_dimension_numbers<[1], [0], [0], [1], [0, 0, 1, 1], [], []>} : vector<16x160xbf16>, vector<160x128xbf16>, vector<16x128xf32> -> vector<16x128xf32>
    %c0_3 = arith.constant 0 : index
    %c0_4 = arith.constant 0 : index
    %3 = vector.load %arg3[%c0_3, %c0_4] : memref<1x128xf32, #tpu.memory_space<vmem>>, vector<1x128xf32>
    %4 = vector.broadcast %3 : vector<1x128xf32> to vector<16x128xf32>
    %5 = arith.addf %2, %4 : vector<16x128xf32>
    %cst_5 = arith.constant dense<0.000000e+00> : vector<16xf32>
    %6 = vector.multi_reduction <add>, %5, %cst_5 [1] : vector<16x128xf32> to vector<16xf32>
    %7 = vector.shape_cast %6 : vector<16xf32> to vector<16x1xf32>
    %cst_6 = arith.constant 1.280000e+02 : f32
    %8 = vector.broadcast %cst_6 : f32 to vector<16x1xf32>
    %9 = arith.divf %7, %8 : vector<16x1xf32>
    %10 = vector.broadcast %9 : vector<16x1xf32> to vector<16x128xf32>
    %11 = arith.subf %5, %10 : vector<16x128xf32>
    %12 = vector.broadcast %9 : vector<16x1xf32> to vector<16x128xf32>
    %13 = arith.subf %5, %12 : vector<16x128xf32>
    %14 = arith.mulf %11, %13 : vector<16x128xf32>
    %cst_7 = arith.constant dense<0.000000e+00> : vector<16xf32>
    %15 = vector.multi_reduction <add>, %14, %cst_7 [1] : vector<16x128xf32> to vector<16xf32>
    %16 = vector.shape_cast %15 : vector<16xf32> to vector<16x1xf32>
    %cst_8 = arith.constant 1.280000e+02 : f32
    %17 = vector.broadcast %cst_8 : f32 to vector<16x1xf32>
    %18 = arith.divf %16, %17 : vector<16x1xf32>
    %19 = vector.broadcast %9 : vector<16x1xf32> to vector<16x128xf32>
    %20 = arith.subf %5, %19 : vector<16x128xf32>
    %cst_9 = arith.constant 9.99999974E-6 : f32
    %21 = vector.broadcast %cst_9 : f32 to vector<16x1xf32>
    %22 = arith.addf %18, %21 : vector<16x1xf32>
    %23 = math.rsqrt %22 : vector<16x1xf32>
    %24 = vector.broadcast %23 : vector<16x1xf32> to vector<16x128xf32>
    %25 = arith.mulf %20, %24 : vector<16x128xf32>
    %c0_10 = arith.constant 0 : index
    %c0_11 = arith.constant 0 : index
    %26 = vector.load %arg4[%c0_10, %c0_11] : memref<2x128xf32, #tpu.memory_space<vmem>>, vector<1x128xf32>
    %27 = vector.shape_cast %26 : vector<1x128xf32> to vector<128xf32>
    %28 = vector.shape_cast %27 : vector<128xf32> to vector<1x128xf32>
    %29 = vector.broadcast %28 : vector<1x128xf32> to vector<16x128xf32>
    %30 = arith.mulf %25, %29 : vector<16x128xf32>
    %c0_12 = arith.constant 0 : index
    %c0_13 = arith.constant 0 : index
    %31 = vector.load %arg5[%c0_12, %c0_13] : memref<2x128xf32, #tpu.memory_space<vmem>>, vector<1x128xf32>
    %32 = vector.shape_cast %31 : vector<1x128xf32> to vector<128xf32>
    %33 = vector.shape_cast %32 : vector<128xf32> to vector<1x128xf32>
    %34 = vector.broadcast %33 : vector<1x128xf32> to vector<16x128xf32>
    %35 = arith.addf %30, %34 : vector<16x128xf32>
    %36 = arith.truncf %35 : vector<16x128xf32> to vector<16x128xbf16>
    %c0_14 = arith.constant 0 : index
    %c0_15 = arith.constant 0 : index
    %c0_16 = arith.constant 0 : index
    %37 = vector.load %arg6[%c0_14, %c0_15, %c0_16] : memref<2x128x512xbf16, #tpu.memory_space<vmem>>, vector<1x128x512xbf16>
    %38 = vector.shape_cast %37 : vector<1x128x512xbf16> to vector<128x512xbf16>
    %cst_17 = arith.constant dense<0.000000e+00> : vector<16x512xf32>
    %39 = tpu.matmul %36, %38, %cst_17 {dimension_numbers = #tpu.dot_dimension_numbers<[1], [0], [0], [1], [0, 0, 1, 1], [], []>} : vector<16x128xbf16>, vector<128x512xbf16>, vector<16x512xf32> -> vector<16x512xf32>
    %c0_18 = arith.constant 0 : index
    %c0_19 = arith.constant 0 : index
    %40 = vector.load %arg7[%c0_18, %c0_19] : memref<2x512xf32, #tpu.memory_space<vmem>>, vector<1x512xf32>
    %41 = vector.shape_cast %40 : vector<1x512xf32> to vector<512xf32>
    %42 = vector.shape_cast %41 : vector<512xf32> to vector<1x512xf32>
    %43 = vector.broadcast %42 : vector<1x512xf32> to vector<16x512xf32>
    %44 = arith.addf %39, %43 : vector<16x512xf32>
    %cst_20 = arith.constant 0.000000e+00 : f32
    %45 = vector.broadcast %cst_20 : f32 to vector<16x512xf32>
    %46 = arith.maximumf %44, %45 : vector<16x512xf32>
    %47 = arith.truncf %46 : vector<16x512xf32> to vector<16x512xbf16>
    %c0_21 = arith.constant 0 : index
    %c0_22 = arith.constant 0 : index
    %c0_23 = arith.constant 0 : index
    %48 = vector.load %arg8[%c0_21, %c0_22, %c0_23] : memref<2x512x128xbf16, #tpu.memory_space<vmem>>, vector<1x512x128xbf16>
    %49 = vector.shape_cast %48 : vector<1x512x128xbf16> to vector<512x128xbf16>
    %cst_24 = arith.constant dense<0.000000e+00> : vector<16x128xf32>
    %50 = tpu.matmul %47, %49, %cst_24 {dimension_numbers = #tpu.dot_dimension_numbers<[1], [0], [0], [1], [0, 0, 1, 1], [], []>} : vector<16x512xbf16>, vector<512x128xbf16>, vector<16x128xf32> -> vector<16x128xf32>
    %c0_25 = arith.constant 0 : index
    %c0_26 = arith.constant 0 : index
    %51 = vector.load %arg9[%c0_25, %c0_26] : memref<2x128xf32, #tpu.memory_space<vmem>>, vector<1x128xf32>
    %52 = vector.shape_cast %51 : vector<1x128xf32> to vector<128xf32>
    %53 = vector.shape_cast %52 : vector<128xf32> to vector<1x128xf32>
    %54 = vector.broadcast %53 : vector<1x128xf32> to vector<16x128xf32>
    %55 = arith.addf %50, %54 : vector<16x128xf32>
    %56 = arith.addf %5, %55 : vector<16x128xf32>
    %cst_27 = arith.constant dense<0.000000e+00> : vector<16xf32>
    %57 = vector.multi_reduction <add>, %56, %cst_27 [1] : vector<16x128xf32> to vector<16xf32>
    %58 = vector.shape_cast %57 : vector<16xf32> to vector<16x1xf32>
    %cst_28 = arith.constant 1.280000e+02 : f32
    %59 = vector.broadcast %cst_28 : f32 to vector<16x1xf32>
    %60 = arith.divf %58, %59 : vector<16x1xf32>
    %61 = vector.broadcast %60 : vector<16x1xf32> to vector<16x128xf32>
    %62 = arith.subf %56, %61 : vector<16x128xf32>
    %63 = vector.broadcast %60 : vector<16x1xf32> to vector<16x128xf32>
    %64 = arith.subf %56, %63 : vector<16x128xf32>
    %65 = arith.mulf %62, %64 : vector<16x128xf32>
    %cst_29 = arith.constant dense<0.000000e+00> : vector<16xf32>
    %66 = vector.multi_reduction <add>, %65, %cst_29 [1] : vector<16x128xf32> to vector<16xf32>
    %67 = vector.shape_cast %66 : vector<16xf32> to vector<16x1xf32>
    %cst_30 = arith.constant 1.280000e+02 : f32
    %68 = vector.broadcast %cst_30 : f32 to vector<16x1xf32>
    %69 = arith.divf %67, %68 : vector<16x1xf32>
    %70 = vector.broadcast %60 : vector<16x1xf32> to vector<16x128xf32>
    %71 = arith.subf %56, %70 : vector<16x128xf32>
    %cst_31 = arith.constant 9.99999974E-6 : f32
    %72 = vector.broadcast %cst_31 : f32 to vector<16x1xf32>
    %73 = arith.addf %69, %72 : vector<16x1xf32>
    %74 = math.rsqrt %73 : vector<16x1xf32>
    %75 = vector.broadcast %74 : vector<16x1xf32> to vector<16x128xf32>
    %76 = arith.mulf %71, %75 : vector<16x128xf32>
    %c1 = arith.constant 1 : index
    %c0_32 = arith.constant 0 : index
    %77 = vector.load %arg4[%c1, %c0_32] : memref<2x128xf32, #tpu.memory_space<vmem>>, vector<1x128xf32>
    %78 = vector.shape_cast %77 : vector<1x128xf32> to vector<128xf32>
    %79 = vector.shape_cast %78 : vector<128xf32> to vector<1x128xf32>
    %80 = vector.broadcast %79 : vector<1x128xf32> to vector<16x128xf32>
    %81 = arith.mulf %76, %80 : vector<16x128xf32>
    %c1_33 = arith.constant 1 : index
    %c0_34 = arith.constant 0 : index
    %82 = vector.load %arg5[%c1_33, %c0_34] : memref<2x128xf32, #tpu.memory_space<vmem>>, vector<1x128xf32>
    %83 = vector.shape_cast %82 : vector<1x128xf32> to vector<128xf32>
    %84 = vector.shape_cast %83 : vector<128xf32> to vector<1x128xf32>
    %85 = vector.broadcast %84 : vector<1x128xf32> to vector<16x128xf32>
    %86 = arith.addf %81, %85 : vector<16x128xf32>
    %87 = arith.truncf %86 : vector<16x128xf32> to vector<16x128xbf16>
    %c1_35 = arith.constant 1 : index
    %c0_36 = arith.constant 0 : index
    %c0_37 = arith.constant 0 : index
    %88 = vector.load %arg6[%c1_35, %c0_36, %c0_37] : memref<2x128x512xbf16, #tpu.memory_space<vmem>>, vector<1x128x512xbf16>
    %89 = vector.shape_cast %88 : vector<1x128x512xbf16> to vector<128x512xbf16>
    %cst_38 = arith.constant dense<0.000000e+00> : vector<16x512xf32>
    %90 = tpu.matmul %87, %89, %cst_38 {dimension_numbers = #tpu.dot_dimension_numbers<[1], [0], [0], [1], [0, 0, 1, 1], [], []>} : vector<16x128xbf16>, vector<128x512xbf16>, vector<16x512xf32> -> vector<16x512xf32>
    %c1_39 = arith.constant 1 : index
    %c0_40 = arith.constant 0 : index
    %91 = vector.load %arg7[%c1_39, %c0_40] : memref<2x512xf32, #tpu.memory_space<vmem>>, vector<1x512xf32>
    %92 = vector.shape_cast %91 : vector<1x512xf32> to vector<512xf32>
    %93 = vector.shape_cast %92 : vector<512xf32> to vector<1x512xf32>
    %94 = vector.broadcast %93 : vector<1x512xf32> to vector<16x512xf32>
    %95 = arith.addf %90, %94 : vector<16x512xf32>
    %cst_41 = arith.constant 0.000000e+00 : f32
    %96 = vector.broadcast %cst_41 : f32 to vector<16x512xf32>
    %97 = arith.maximumf %95, %96 : vector<16x512xf32>
    %98 = arith.truncf %97 : vector<16x512xf32> to vector<16x512xbf16>
    %c1_42 = arith.constant 1 : index
    %c0_43 = arith.constant 0 : index
    %c0_44 = arith.constant 0 : index
    %99 = vector.load %arg8[%c1_42, %c0_43, %c0_44] : memref<2x512x128xbf16, #tpu.memory_space<vmem>>, vector<1x512x128xbf16>
    %100 = vector.shape_cast %99 : vector<1x512x128xbf16> to vector<512x128xbf16>
    %cst_45 = arith.constant dense<0.000000e+00> : vector<16x128xf32>
    %101 = tpu.matmul %98, %100, %cst_45 {dimension_numbers = #tpu.dot_dimension_numbers<[1], [0], [0], [1], [0, 0, 1, 1], [], []>} : vector<16x512xbf16>, vector<512x128xbf16>, vector<16x128xf32> -> vector<16x128xf32>
    %c1_46 = arith.constant 1 : index
    %c0_47 = arith.constant 0 : index
    %102 = vector.load %arg9[%c1_46, %c0_47] : memref<2x128xf32, #tpu.memory_space<vmem>>, vector<1x128xf32>
    %103 = vector.shape_cast %102 : vector<1x128xf32> to vector<128xf32>
    %104 = vector.shape_cast %103 : vector<128xf32> to vector<1x128xf32>
    %105 = vector.broadcast %104 : vector<1x128xf32> to vector<16x128xf32>
    %106 = arith.addf %101, %105 : vector<16x128xf32>
    %107 = arith.addf %56, %106 : vector<16x128xf32>
    %cst_48 = arith.constant 0.000000e+00 : f32
    %108 = vector.broadcast %cst_48 : f32 to vector<16x128xf32>
    %109 = arith.maximumf %107, %108 : vector<16x128xf32>
    %110 = arith.truncf %109 : vector<16x128xf32> to vector<16x128xbf16>
    %c0_49 = arith.constant 0 : index
    %c0_50 = arith.constant 0 : index
    %111 = vector.load %arg10[%c0_49, %c0_50] : memref<128x128xbf16, #tpu.memory_space<vmem>>, vector<128x128xbf16>
    %cst_51 = arith.constant dense<0.000000e+00> : vector<16x128xf32>
    %112 = tpu.matmul %110, %111, %cst_51 {dimension_numbers = #tpu.dot_dimension_numbers<[1], [0], [0], [1], [0, 0, 1, 1], [], []>} : vector<16x128xbf16>, vector<128x128xbf16>, vector<16x128xf32> -> vector<16x128xf32>
    %c0_52 = arith.constant 0 : index
    %c0_53 = arith.constant 0 : index
    %113 = vector.load %arg11[%c0_52, %c0_53] : memref<1x128xf32, #tpu.memory_space<vmem>>, vector<1x128xf32>
    %114 = vector.broadcast %113 : vector<1x128xf32> to vector<16x128xf32>
    %115 = arith.addf %112, %114 : vector<16x128xf32>
    %c0_54 = arith.constant 0 : index
    %c0_55 = arith.constant 0 : index
    %116 = vector.load %arg12[%c0_54, %c0_55] : memref<16x128xf32, #tpu.memory_space<vmem>>, vector<16x128xf32>
    tpu.vector_store %arg12[%c0_54, %c0_55], %115 {strides = array<i32>} : memref<16x128xf32, #tpu.memory_space<vmem>>, vector<16x128xf32>,
    return
  }
  func.func @transform_0(%arg0: i32) -> (i32, i32) {
    %c0_i32 = arith.constant 0 : i32
    %c0_i32_0 = arith.constant 0 : i32
    return %arg0, %c0_i32 : i32, i32
  }
  func.func @transform_1(%arg0: i32) -> (i32, i32) {
    %c0_i32 = arith.constant 0 : i32
    %c0_i32_0 = arith.constant 0 : i32
    %c0_i32_1 = arith.constant 0 : i32
    return %c0_i32, %c0_i32_0 : i32, i32
  }
  func.func @transform_2(%arg0: i32) -> (i32, i32) {
    %c0_i32 = arith.constant 0 : i32
    %c0_i32_0 = arith.constant 0 : i32
    %c0_i32_1 = arith.constant 0 : i32
    return %c0_i32, %c0_i32_0 : i32, i32
  }
  func.func @transform_3(%arg0: i32) -> (i32, i32) {
    %c0_i32 = arith.constant 0 : i32
    %c0_i32_0 = arith.constant 0 : i32
    %c0_i32_1 = arith.constant 0 : i32
    return %c0_i32, %c0_i32_0 : i32, i32
  }
  func.func @transform_4(%arg0: i32) -> (i32, i32) {
    %c0_i32 = arith.constant 0 : i32
    %c0_i32_0 = arith.constant 0 : i32
    %c0_i32_1 = arith.constant 0 : i32
    return %c0_i32, %c0_i32_0 : i32, i32
  }
  func.func @transform_5(%arg0: i32) -> (i32, i32, i32) {
    %c0_i32 = arith.constant 0 : i32
    %c0_i32_0 = arith.constant 0 : i32
    %c0_i32_1 = arith.constant 0 : i32
    %c0_i32_2 = arith.constant 0 : i32
    return %c0_i32, %c0_i32_0, %c0_i32_1 : i32, i32, i32
  }
  func.func @transform_6(%arg0: i32) -> (i32, i32) {
    %c0_i32 = arith.constant 0 : i32
    %c0_i32_0 = arith.constant 0 : i32
    %c0_i32_1 = arith.constant 0 : i32
    return %c0_i32, %c0_i32_0 : i32, i32
  }
  func.func @transform_7(%arg0: i32) -> (i32, i32, i32) {
    %c0_i32 = arith.constant 0 : i32
    %c0_i32_0 = arith.constant 0 : i32
    %c0_i32_1 = arith.constant 0 : i32
    %c0_i32_2 = arith.constant 0 : i32
    return %c0_i32, %c0_i32_0, %c0_i32_1 : i32, i32, i32
  }
  func.func @transform_8(%arg0: i32) -> (i32, i32) {
    %c0_i32 = arith.constant 0 : i32
    %c0_i32_0 = arith.constant 0 : i32
    %c0_i32_1 = arith.constant 0 : i32
    return %c0_i32, %c0_i32_0 : i32, i32
  }
  func.func @transform_9(%arg0: i32) -> (i32, i32) {
    %c0_i32 = arith.constant 0 : i32
    %c0_i32_0 = arith.constant 0 : i32
    %c0_i32_1 = arith.constant 0 : i32
    return %c0_i32, %c0_i32_0 : i32, i32
  }
  func.func @transform_10(%arg0: i32) -> (i32, i32) {
    %c0_i32 = arith.constant 0 : i32
    %c0_i32_0 = arith.constant 0 : i32
    %c0_i32_1 = arith.constant 0 : i32
    return %c0_i32, %c0_i32_0 : i32, i32
  }
  func.func @transform_11(%arg0: i32) -> (i32, i32) {
    %c0_i32 = arith.constant 0 : i32
    %c0_i32_0 = arith.constant 0 : i32
    return %arg0, %c0_i32 : i32, i32
  }
}

</mosaic_0001>

<llo_original>
// kernel: mlp_resnet_forward.1
$region0: #{mlp_resnet_forward.1}
  #allocation0 [shape = 'u32[]', space=smem, size = 0x4, offset = 0x4, fixed_abs, tag = 'smem constant byte address 0x4 - core index']
  #allocation1 [shape = 'u32[144,128]{1,0:T(1,128)}', space=vmem, size = 0x12000, scoped, tag = 'internal scratch']
  %s0 = inlined_call_operand.vmem [shape: bf16[32,160], index: 0, kind: input, shape index: {}]
  %s1 = inlined_call_operand.vmem [shape: bf16[160,128], index: 1, kind: input, shape index: {}]
  %s2 = inlined_call_operand.vmem [shape: f32[1,128], index: 2, kind: input, shape index: {}]
  %s3 = inlined_call_operand.vmem [shape: f32[2,128], index: 3, kind: input, shape index: {}]
  %s4 = inlined_call_operand.vmem [shape: f32[2,128], index: 4, kind: input, shape index: {}]
  %s5 = inlined_call_operand.hbm [shape: bf16[2,128,512], index: 5, kind: input, shape index: {}]
  %s6 = inlined_call_operand.vmem [shape: f32[2,512], index: 6, kind: input, shape index: {}]
  %s7 = inlined_call_operand.hbm [shape: bf16[2,512,128], index: 7, kind: input, shape index: {}]
  %s8 = inlined_call_operand.vmem [shape: f32[2,128], index: 8, kind: input, shape index: {}]
  %s9 = inlined_call_operand.vmem [shape: bf16[128,128], index: 9, kind: input, shape index: {}]
  %s10 = inlined_call_operand.vmem [shape: f32[1,128], index: 10, kind: input, shape index: {}]
  %s11 = inlined_call_operand.hbm [shape: f32[32,128], index: 11, kind: output, shape index: {}]
  %s12 = sld [smem:[#allocation0]]
  $region85: #{mlp_resnet_forward.1} parent=0
    _
  %s14 = ssub.s32 1, %s12
  %s15 = scalar_select 0, %s14, %s12
  $region1: #{mlp_resnet_forward.1} parent=0
    #allocation2 [shape = 'u8[262144]{0}', space=vmem, size = 0x40000, scoped, tag = 'input window, operand 5, single buffered']
    #allocation3 [shape = 's32[2]{0}', space=sflag, size = 0x8, scoped, tag = 'scoped memory for mlp_resnet_forward.1']
    #allocation4 [shape = 's32[2]{0}', space=sflag, size = 0x8, scoped, tag = 'scoped memory for mlp_resnet_forward.1']
    #allocation5 [shape = 'u8[262144]{0}', space=vmem, size = 0x40000, scoped, tag = 'input window, operand 7, single buffered']
    #allocation6 [shape = 's32[1]{0}', space=sflag, size = 0x4, scoped, tag = 'scoped memory for mlp_resnet_forward.1']
    #allocation7 [shape = 'u8[16384]{0}', space=vmem, size = 0x4000, scoped, tag = 'output window, operand 0']
    %16 = vsyncpa [#allocation3], 0
    %17 = vsyncpa [#allocation6], 0
    %18 = vsyncpa [#allocation4], 0
    %s19 = scalar_lea.sflag [#allocation4], 1
    %20 = vsyncpa %s19, 0
    loop: start=0, step=1, limit=4
    $region2: #{mlp_resnet_forward.1} parent=1 // loop_pre_header
      _
    $region3: #{mlp_resnet_forward.1} parent=1 // loop_header
      %s22 = sphi 0, %s26
      %p23 = scmp.ge.s32.totalorder %s22, 4
      %s32 = sphi 0, %s34
      %s35 = sphi 0, %s32
      %s36 = sphi 0, %s35
      %s52 = sphi 0, %s36
      %s56 = sphi 0, %s56
      %s58 = sphi 0, %s56
      %s59 = sphi 0, %s58
      %s73 = sphi 0, %s59
      %s77 = sphi 0, %s77
      %s79 = sphi 0, %s77
      %s80 = sphi 0, %s79
      %s94 = sphi 0, %s80
      %s98 = sphi 0, %s98
      %s100 = sphi 0, %s98
      %s101 = sphi 0, %s100
      %s115 = sphi 0, %s101
      %s119 = sphi 0, %s119
      %s121 = sphi 0, %s119
      %s122 = sphi 0, %s121
      %s136 = sphi 0, %s122
      %s140 = sphi 0, %s140
      %s142 = sphi 0, %s140
      %s143 = sphi 0, %s142
      %s157 = sphi 0, %s143
      %s161 = sphi 0, %s161
      %s163 = sphi 0, %s161
      %s164 = sphi 0, %s163
      %s178 = sphi 0, %s164
      %s182 = sphi 0, %s182
      %s184 = sphi 0, %s182
      %s185 = sphi 0, %s184
      %s199 = sphi 0, %s185
      %s203 = sphi 0, %s203
      %s205 = sphi 0, %s203
      %s206 = sphi 0, %s205
      %s220 = sphi 0, %s206
      %s224 = sphi 0, %s224
      %s226 = sphi 0, %s224
      %s227 = sphi 0, %s226
      %s241 = sphi 0, %s227
      %s245 = sphi 0, %s245
      %s247 = sphi 0, %s245
      %s248 = sphi 0, %s247
      %s262 = sphi 0, %s248
      %s268 = sphi 0, %s270
      %s271 = sphi 0, %s268
      %s272 = sphi 0, %s271
      %s288 = sphi 0, %s272
    $region4: #{mlp_resnet_forward.1} parent=1 // loop_header_branch
      %25 = sbr.rel (%p23) target = $region8
    $region5: #{mlp_resnet_forward.1} parent=1 // loop_body
      %s27 = ssub.s32 %s22, 1
      %s28 = ssub.s32 %s22, 2
      %s29 = sadd.s32 %s22, 1
      %s30 = ssub.s32 %s22, %s29
      %p31 = scmp.eq.s32.totalorder %s30, 0
      %s33 = sadd.s32 %s32, 1
      %s34 = scalar_select %p31, %s32, %s33
      %p37 = pneg %p31
      %p38 = scmp.eq.s32.totalorder %s22, 1
      %p39 = por %p37, %p38
      %p40 = scmp.ne.s32.totalorder %s32, %s35
      %p41 = scmp.eq.s32.totalorder %s22, 0
      %p42 = por %p40, %p41
      %p43 = scmp.ne.s32.totalorder %s32, %s35
      %p44 = scmp.eq.s32.totalorder %s27, 1
      %p45 = por %p43, %p44
      %p46 = scmp.ne.s32.totalorder %s35, %s36
      %p47 = scmp.eq.s32.totalorder %s27, 0
      %p48 = por %p46, %p47
      %p49 = scmp.ne.s32.totalorder %s35, %s36
      %p50 = scmp.eq.s32.totalorder %s28, 1
      %p51 = por %p49, %p50
      %p53 = scmp.ne.s32.totalorder %s36, %s52
      %p54 = scmp.eq.s32.totalorder %s28, 0
      %p55 = por %p53, %p54
      %s57 = sadd.s32 %s56, 1
      %p60 = scmp.eq.s32.totalorder %s22, 1
      %p61 = scmp.ne.s32.totalorder %s56, %s58
      %p62 = scmp.eq.s32.totalorder %s22, 0
      %p63 = por %p61, %p62
      %p64 = scmp.ne.s32.totalorder %s56, %s58
      %p65 = scmp.eq.s32.totalorder %s27, 1
      %p66 = por %p64, %p65
      %p67 = scmp.ne.s32.totalorder %s58, %s59
      %p68 = scmp.eq.s32.totalorder %s27, 0
      %p69 = por %p67, %p68
      %p70 = scmp.ne.s32.totalorder %s58, %s59
      %p71 = scmp.eq.s32.totalorder %s28, 1
      %p72 = por %p70, %p71
      %p74 = scmp.ne.s32.totalorder %s59, %s73
      %p75 = scmp.eq.s32.totalorder %s28, 0
      %p76 = por %p74, %p75
      %s78 = sadd.s32 %s77, 1
      %p81 = scmp.eq.s32.totalorder %s22, 1
      %p82 = scmp.ne.s32.totalorder %s77, %s79
      %p83 = scmp.eq.s32.totalorder %s22, 0
      %p84 = por %p82, %p83
      %p85 = scmp.ne.s32.totalorder %s77, %s79
      %p86 = scmp.eq.s32.totalorder %s27, 1
      %p87 = por %p85, %p86
      %p88 = scmp.ne.s32.totalorder %s79, %s80
      %p89 = scmp.eq.s32.totalorder %s27, 0
      %p90 = por %p88, %p89
      %p91 = scmp.ne.s32.totalorder %s79, %s80
      %p92 = scmp.eq.s32.totalorder %s28, 1
      %p93 = por %p91, %p92
      %p95 = scmp.ne.s32.totalorder %s80, %s94
      %p96 = scmp.eq.s32.totalorder %s28, 0
      %p97 = por %p95, %p96
      %s99 = sadd.s32 %s98, 1
      %p102 = scmp.eq.s32.totalorder %s22, 1
      %p103 = scmp.ne.s32.totalorder %s98, %s100
      %p104 = scmp.eq.s32.totalorder %s22, 0
      %p105 = por %p103, %p104
      %p106 = scmp.ne.s32.totalorder %s98, %s100
      %p107 = scmp.eq.s32.totalorder %s27, 1
      %p108 = por %p106, %p107
      %p109 = scmp.ne.s32.totalorder %s100, %s101
      %p110 = scmp.eq.s32.totalorder %s27, 0
      %p111 = por %p109, %p110
      %p112 = scmp.ne.s32.totalorder %s100, %s101
      %p113 = scmp.eq.s32.totalorder %s28, 1
      %p114 = por %p112, %p113
      %p116 = scmp.ne.s32.totalorder %s101, %s115
      %p117 = scmp.eq.s32.totalorder %s28, 0
      %p118 = por %p116, %p117
      %s120 = sadd.s32 %s119, 1
      %p123 = scmp.eq.s32.totalorder %s22, 1
      %p124 = scmp.ne.s32.totalorder %s119, %s121
      %p125 = scmp.eq.s32.totalorder %s22, 0
      %p126 = por %p124, %p125
      %p127 = scmp.ne.s32.totalorder %s119, %s121
      %p128 = scmp.eq.s32.totalorder %s27, 1
      %p129 = por %p127, %p128
      %p130 = scmp.ne.s32.totalorder %s121, %s122
      %p131 = scmp.eq.s32.totalorder %s27, 0
      %p132 = por %p130, %p131
      %p133 = scmp.ne.s32.totalorder %s121, %s122
      %p134 = scmp.eq.s32.totalorder %s28, 1
      %p135 = por %p133, %p134
      %p137 = scmp.ne.s32.totalorder %s122, %s136
      %p138 = scmp.eq.s32.totalorder %s28, 0
      %p139 = por %p137, %p138
      %s141 = sadd.s32 %s140, 1
      %p144 = scmp.eq.s32.totalorder %s22, 1
      %p145 = scmp.ne.s32.totalorder %s140, %s142
      %p146 = scmp.eq.s32.totalorder %s22, 0
      %p147 = por %p145, %p146
      %p148 = scmp.ne.s32.totalorder %s140, %s142
      %p149 = scmp.eq.s32.totalorder %s27, 1
      %p150 = por %p148, %p149
      %p151 = scmp.ne.s32.totalorder %s142, %s143
      %p152 = scmp.eq.s32.totalorder %s27, 0
      %p153 = por %p151, %p152
      %p154 = scmp.ne.s32.totalorder %s142, %s143
      %p155 = scmp.eq.s32.totalorder %s28, 1
      %p156 = por %p154, %p155
      %p158 = scmp.ne.s32.totalorder %s143, %s157
      %p159 = scmp.eq.s32.totalorder %s28, 0
      %p160 = por %p158, %p159
      %s162 = sadd.s32 %s161, 1
      %p165 = scmp.eq.s32.totalorder %s22, 1
      %p166 = scmp.ne.s32.totalorder %s161, %s163
      %p167 = scmp.eq.s32.totalorder %s22, 0
      %p168 = por %p166, %p167
      %p169 = scmp.ne.s32.totalorder %s161, %s163
      %p170 = scmp.eq.s32.totalorder %s27, 1
      %p171 = por %p169, %p170
      %p172 = scmp.ne.s32.totalorder %s163, %s164
      %p173 = scmp.eq.s32.totalorder %s27, 0
      %p174 = por %p172, %p173
      %p175 = scmp.ne.s32.totalorder %s163, %s164
      %p176 = scmp.eq.s32.totalorder %s28, 1
      %p177 = por %p175, %p176
      %p179 = scmp.ne.s32.totalorder %s164, %s178
      %p180 = scmp.eq.s32.totalorder %s28, 0
      %p181 = por %p179, %p180
      %s183 = sadd.s32 %s182, 1
      %p186 = scmp.eq.s32.totalorder %s22, 1
      %p187 = scmp.ne.s32.totalorder %s182, %s184
      %p188 = scmp.eq.s32.totalorder %s22, 0
      %p189 = por %p187, %p188
      %p190 = scmp.ne.s32.totalorder %s182, %s184
      %p191 = scmp.eq.s32.totalorder %s27, 1
      %p192 = por %p190, %p191
      %p193 = scmp.ne.s32.totalorder %s184, %s185
      %p194 = scmp.eq.s32.totalorder %s27, 0
      %p195 = por %p193, %p194
      %p196 = scmp.ne.s32.totalorder %s184, %s185
      %p197 = scmp.eq.s32.totalorder %s28, 1
      %p198 = por %p196, %p197
      %p200 = scmp.ne.s32.totalorder %s185, %s199
      %p201 = scmp.eq.s32.totalorder %s28, 0
      %p202 = por %p200, %p201
      %s204 = sadd.s32 %s203, 1
      %p207 = scmp.eq.s32.totalorder %s22, 1
      %p208 = scmp.ne.s32.totalorder %s203, %s205
      %p209 = scmp.eq.s32.totalorder %s22, 0
      %p210 = por %p208, %p209
      %p211 = scmp.ne.s32.totalorder %s203, %s205
      %p212 = scmp.eq.s32.totalorder %s27, 1
      %p213 = por %p211, %p212
      %p214 = scmp.ne.s32.totalorder %s205, %s206
      %p215 = scmp.eq.s32.totalorder %s27, 0
      %p216 = por %p214, %p215
      %p217 = scmp.ne.s32.totalorder %s205, %s206
      %p218 = scmp.eq.s32.totalorder %s28, 1
      %p219 = por %p217, %p218
      %p221 = scmp.ne.s32.totalorder %s206, %s220
      %p222 = scmp.eq.s32.totalorder %s28, 0
      %p223 = por %p221, %p222
      %s225 = sadd.s32 %s224, 1
      %p228 = scmp.eq.s32.totalorder %s22, 1
      %p229 = scmp.ne.s32.totalorder %s224, %s226
      %p230 = scmp.eq.s32.totalorder %s22, 0
      %p231 = por %p229, %p230
      %p232 = scmp.ne.s32.totalorder %s224, %s226
      %p233 = scmp.eq.s32.totalorder %s27, 1
      %p234 = por %p232, %p233
      %p235 = scmp.ne.s32.totalorder %s226, %s227
      %p236 = scmp.eq.s32.totalorder %s27, 0
      %p237 = por %p235, %p236
      %p238 = scmp.ne.s32.totalorder %s226, %s227
      %p239 = scmp.eq.s32.totalorder %s28, 1
      %p240 = por %p238, %p239
      %p242 = scmp.ne.s32.totalorder %s227, %s241
      %p243 = scmp.eq.s32.totalorder %s28, 0
      %p244 = por %p242, %p243
      %s246 = sadd.s32 %s245, 1
      %p249 = scmp.eq.s32.totalorder %s22, 1
      %p250 = scmp.ne.s32.totalorder %s245, %s247
      %p251 = scmp.eq.s32.totalorder %s22, 0
      %p252 = por %p250, %p251
      %p253 = scmp.ne.s32.totalorder %s245, %s247
      %p254 = scmp.eq.s32.totalorder %s27, 1
      %p255 = por %p253, %p254
      %p256 = scmp.ne.s32.totalorder %s247, %s248
      %p257 = scmp.eq.s32.totalorder %s27, 0
      %p258 = por %p256, %p257
      %p259 = scmp.ne.s32.totalorder %s247, %s248
      %p260 = scmp.eq.s32.totalorder %s28, 1
      %p261 = por %p259, %p260
      %p263 = scmp.ne.s32.totalorder %s248, %s262
      %p264 = scmp.eq.s32.totalorder %s28, 0
      %p265 = por %p263, %p264
      %s266 = ssub.s32 %s22, %s29
      %p267 = scmp.eq.s32.totalorder %s266, 0
      %s269 = sadd.s32 %s268, 1
      %s270 = scalar_select %p267, %s268, %s269
      %p273 = pneg %p267
      %p274 = scmp.eq.s32.totalorder %s22, 1
      %p275 = por %p273, %p274
      %p276 = scmp.ne.s32.totalorder %s268, %s271
      %p277 = scmp.eq.s32.totalorder %s22, 0
      %p278 = por %p276, %p277
      %p279 = scmp.ne.s32.totalorder %s268, %s271
      %p280 = scmp.eq.s32.totalorder %s27, 1
      %p281 = por %p279, %p280
      %p282 = scmp.ne.s32.totalorder %s271, %s272
      %p283 = scmp.eq.s32.totalorder %s27, 0
      %p284 = por %p282, %p283
      %p285 = scmp.ne.s32.totalorder %s271, %s272
      %p286 = scmp.eq.s32.totalorder %s28, 1
      %p287 = por %p285, %p286
      %p289 = scmp.ne.s32.totalorder %s272, %s288
      %p290 = scmp.eq.s32.totalorder %s28, 0
      %p291 = por %p289, %p290
      %p292 = scmp.le.s32.totalorder 1, %s22
      %p293 = scmp.lt.s32.totalorder %s22, 3
      %p294 = pnand %p292, %p293
      %p295 = pneg %p294
      // Predicated region
      $region9: #{mlp_resnet_forward.1} parent=5 // pred_check
        _
      $region10: #{mlp_resnet_forward.1} parent=5 // pred_check_branch
        %297 = sbr.rel (%p294) target = $region12
      $region11: #{mlp_resnet_forward.1} parent=5 // pred_region
        %s298 = ssub.s32 %s22, 1
        // Predicated region
        $region13: #{mlp_resnet_forward.1} parent=11 // pred_check
          %p299 = pneg %p69
        $region14: #{mlp_resnet_forward.1} parent=11 // pred_check_branch
          %301 = sbr.rel (%p299) target = $region16
        $region15: #{mlp_resnet_forward.1} parent=11 // pred_region
          _
        $region16: #{mlp_resnet_forward.1} parent=11 // pred_fallthru
          _
        // Predicated region
        $region17: #{mlp_resnet_forward.1} parent=11 // pred_check
          %p302 = pneg %p90
        $region18: #{mlp_resnet_forward.1} parent=11 // pred_check_branch
          %304 = sbr.rel (%p302) target = $region20
        $region19: #{mlp_resnet_forward.1} parent=11 // pred_region
          _
        $region20: #{mlp_resnet_forward.1} parent=11 // pred_fallthru
          _
        // Predicated region
        $region21: #{mlp_resnet_forward.1} parent=11 // pred_check
          %p305 = pneg %p111
        $region22: #{mlp_resnet_forward.1} parent=11 // pred_check_branch
          %307 = sbr.rel (%p305) target = $region24
        $region23: #{mlp_resnet_forward.1} parent=11 // pred_region
          _
        $region24: #{mlp_resnet_forward.1} parent=11 // pred_fallthru
          _
        // Predicated region
        $region25: #{mlp_resnet_forward.1} parent=11 // pred_check
          %p308 = pneg %p132
        $region26: #{mlp_resnet_forward.1} parent=11 // pred_check_branch
          %310 = sbr.rel (%p308) target = $region28
        $region27: #{mlp_resnet_forward.1} parent=11 // pred_region
          _
        $region28: #{mlp_resnet_forward.1} parent=11 // pred_fallthru
          _
        // Predicated region
        $region29: #{mlp_resnet_forward.1} parent=11 // pred_check
          %p311 = pneg %p153
        $region30: #{mlp_resnet_forward.1} parent=11 // pred_check_branch
          %313 = sbr.rel (%p311) target = $region32
        $region31: #{mlp_resnet_forward.1} parent=11 // pred_region
          %s315 = ssub.s32 8192, 8192
          %316 = vsyncadd [#allocation3], %s315
          %s317 = sshll.u32 [#allocation2], 4
          %s318 = int_to_ptr.vmem [resolvable:$true] %s317
          %323 = dma.hbm_to_vmem [thread:$0]  %s5, 8192, %s318, [#allocation3], 256, 256, 16
        $region32: #{mlp_resnet_forward.1} parent=11 // pred_fallthru
          _
        // Predicated region
        $region33: #{mlp_resnet_forward.1} parent=11 // pred_check
          %p324 = pneg %p174
        $region34: #{mlp_resnet_forward.1} parent=11 // pred_check_branch
          %326 = sbr.rel (%p324) target = $region36
        $region35: #{mlp_resnet_forward.1} parent=11 // pred_region
          _
        $region36: #{mlp_resnet_forward.1} parent=11 // pred_fallthru
          _
        // Predicated region
        $region37: #{mlp_resnet_forward.1} parent=11 // pred_check
          %p327 = pneg %p195
        $region38: #{mlp_resnet_forward.1} parent=11 // pred_check_branch
          %329 = sbr.rel (%p327) target = $region40
        $region39: #{mlp_resnet_forward.1} parent=11 // pred_region
          %s331 = ssub.s32 8192, 8192
          %332 = vsyncadd [#allocation6], %s331
          %s333 = sshll.u32 [#allocation5], 4
          %s334 = int_to_ptr.vmem [resolvable:$true] %s333
          %339 = dma.hbm_to_vmem [thread:$0]  %s7, 8192, %s334, [#allocation6], 64, 64, 4
        $region40: #{mlp_resnet_forward.1} parent=11 // pred_fallthru
          _
        // Predicated region
        $region41: #{mlp_resnet_forward.1} parent=11 // pred_check
          %p340 = pneg %p216
        $region42: #{mlp_resnet_forward.1} parent=11 // pred_check_branch
          %342 = sbr.rel (%p340) target = $region44
        $region43: #{mlp_resnet_forward.1} parent=11 // pred_region
          _
        $region44: #{mlp_resnet_forward.1} parent=11 // pred_fallthru
          _
        // Predicated region
        $region45: #{mlp_resnet_forward.1} parent=11 // pred_check
          %p343 = pneg %p237
        $region46: #{mlp_resnet_forward.1} parent=11 // pred_check_branch
          %345 = sbr.rel (%p343) target = $region48
        $region47: #{mlp_resnet_forward.1} parent=11 // pred_region
          _
        $region48: #{mlp_resnet_forward.1} parent=11 // pred_fallthru
          _
        // Predicated region
        $region49: #{mlp_resnet_forward.1} parent=11 // pred_check
          %p346 = pneg %p258
        $region50: #{mlp_resnet_forward.1} parent=11 // pred_check_branch
          %348 = sbr.rel (%p346) target = $region52
        $region51: #{mlp_resnet_forward.1} parent=11 // pred_region
          _
        $region52: #{mlp_resnet_forward.1} parent=11 // pred_fallthru
          _
      $region12: #{mlp_resnet_forward.1} parent=5 // pred_fallthru
        _
      %p349 = scmp.lt.s32.totalorder %s22, 2
      // Predicated region
      $region53: #{mlp_resnet_forward.1} parent=5 // pred_check
        %p350 = pneg %p349
      $region54: #{mlp_resnet_forward.1} parent=5 // pred_check_branch
        %352 = sbr.rel (%p350) target = $region56
      $region55: #{mlp_resnet_forward.1} parent=5 // pred_region
        // Predicated region
        $region57: #{mlp_resnet_forward.1} parent=55 // pred_check
          %p353 = pneg %p42
        $region58: #{mlp_resnet_forward.1} parent=55 // pred_check_branch
          %355 = sbr.rel (%p353) target = $region60
        $region59: #{mlp_resnet_forward.1} parent=55 // pred_region
          %s356 = smul.u32 2, %s22
          %p357 = scmp.lt.s32.totalorder %s356, 3
          %s358 = scalar_select %p357, %s356, 3
          %s359 = smul.addr %s358, 2
          %s360 = smul.addr %s359, 4
          %s361 = scalar_lea.vmem %s0, %s360
          %s362 = smul.u32 2, %s22
        $region60: #{mlp_resnet_forward.1} parent=55 // pred_fallthru
          _
      $region56: #{mlp_resnet_forward.1} parent=5 // pred_fallthru
        _
      %p363 = scmp.le.s32.totalorder 1, %s22
      %p364 = scmp.lt.s32.totalorder %s22, 3
      %p365 = pnand %p363, %p364
      %p366 = pneg %p365
      // Predicated region
      $region61: #{mlp_resnet_forward.1} parent=5 // pred_check
        _
      $region62: #{mlp_resnet_forward.1} parent=5 // pred_check_branch
        %368 = sbr.rel (%p365) target = $region64
      $region63: #{mlp_resnet_forward.1} parent=5 // pred_region
        %s369 = ssub.s32 %s22, 1
        // Predicated region
        $region65: #{mlp_resnet_forward.1} parent=63 // pred_check
          %p370 = pneg %p153
        $region66: #{mlp_resnet_forward.1} parent=63 // pred_check_branch
          %372 = sbr.rel (%p370) target = $region68
        $region67: #{mlp_resnet_forward.1} parent=63 // pred_region
          %373 = dma.done [#allocation3], 8192
        $region68: #{mlp_resnet_forward.1} parent=63 // pred_fallthru
          _
        // Predicated region
        $region69: #{mlp_resnet_forward.1} parent=63 // pred_check
          %p374 = pneg %p195
        $region70: #{mlp_resnet_forward.1} parent=63 // pred_check_branch
          %376 = sbr.rel (%p374) target = $region72
        $region71: #{mlp_resnet_forward.1} parent=63 // pred_region
          %377 = dma.done [#allocation6], 8192
        $region72: #{mlp_resnet_forward.1} parent=63 // pred_fallthru
          _
        %s378 = smul.u32 2, %s27
        %p379 = scmp.lt.s32.totalorder %s378, 3
        %s380 = scalar_select %p379, %s378, 3
        %s381 = smul.addr %s380, 2
        %s382 = smul.addr %s381, 4
        %s383 = scalar_lea.vmem %s0, %s382
        %p384 = pneg %p48
        %p385 = pneg %p45
        %p386 = pneg %p69
        %p387 = pneg %p66
        %p388 = pneg %p90
        %p389 = pneg %p87
        %p390 = pneg %p111
        %p391 = pneg %p108
        %p392 = pneg %p132
        %p393 = pneg %p129
        %p394 = pneg %p153
        %p395 = pneg %p150
        %p396 = pneg %p174
        %p397 = pneg %p171
        %p398 = pneg %p195
        %p399 = pneg %p192
        %p400 = pneg %p216
        %p401 = pneg %p213
        %p402 = pneg %p237
        %p403 = pneg %p234
        %p404 = pneg %p258
        %p405 = pneg %p255
        %p406 = pneg %p284
        %p407 = pneg %p281
        %s408 = sand.u32 %s271, 1
        %s409 = scalar_lea.sflag [#allocation4], %s408
        %s410 = sand.u32 %s271, 1
        %s411 = smul.addr %s410, 16
        %s412 = scalar_lea.vmem [#allocation7], %s411
        %s413 = smul.u32 2, %s27
        %p414 = scmp.lt.s32.totalorder %s413, 3
        %s415 = scalar_select %p414, %s413, 3
        %s416 = smul.addr %s415, 2
        %s417 = smul.addr %s416, 4
        %s418 = scalar_lea.vmem %s0, %s417
        %s419 = smul.u32 2, %s27
        %s420 = smul.u32 2, %s27
        %v422 = vld [vmem:[%s418] sm:$0xff]
        %v423 = vld [vmem:[%s418 + $0x8] sm:$0xff]
        %v424 = vld [vmem:[%s1] sm:$0xf]
        %v425 = vld [vmem:[%s1 + $0x4] sm:$0xf]
        %v426 = vld [vmem:[%s1 + $0x8] sm:$0xf]
        %v427 = vld [vmem:[%s1 + $0xc] sm:$0xf]
        %v428 = vld [vmem:[%s1 + $0x10] sm:$0xf]
        %v429 = vld [vmem:[%s1 + $0x14] sm:$0xf]
        %v430 = vld [vmem:[%s1 + $0x18] sm:$0xf]
        %v431 = vld [vmem:[%s1 + $0x1c] sm:$0xf]
        %v432 = vld [vmem:[%s1 + $0x20] sm:$0xf]
        %v433 = vld [vmem:[%s1 + $0x24] sm:$0xf]
        %v434 = vld [vmem:[%s1 + $0x28] sm:$0xf]
        %v435 = vld [vmem:[%s1 + $0x2c] sm:$0xf]
        %v436 = vld [vmem:[%s1 + $0x30] sm:$0xf]
        %v437 = vld [vmem:[%s1 + $0x34] sm:$0xf]
        %v438 = vld [vmem:[%s1 + $0x38] sm:$0xf]
        %v439 = vld [vmem:[%s1 + $0x3c] sm:$0xf]
        %v440 = vld [vmem:[%s1 + $0x40] sm:$0xf]
        %v441 = vld [vmem:[%s1 + $0x44] sm:$0xf]
        %v442 = vld [vmem:[%s1 + $0x48] sm:$0xf]
        %v443 = vld [vmem:[%s1 + $0x4c] sm:$0xf]
        %v444 = vld [vmem:[%s2] sm:$0x1]
        %v446 = vlaneseq
        %v447 = vshrl.u32 %v446, 7
        %v448 = vsub.s32 0, %v447
        %v449 = vrot.slane %v444, %v448
        %v453 = vunpack.c.l.b16 %v422
        %v454 = vunpack.c.h.b16 %v422
        %v455 = vunpack.c.l.b16 %v423
        %v456 = vunpack.c.h.b16 %v423
        %v457 = vpack.c.b16 %v455, %v453
        %v458 = vpack.c.b16 %v456, %v454
        %v480 = vunpack.c.l.b16 %v424
        %v481 = vunpack.c.l.b16 %v425
        %v482 = vunpack.c.l.b16 %v426
        %v483 = vunpack.c.l.b16 %v427
        %v484 = vunpack.c.l.b16 %v428
        %v485 = vunpack.c.l.b16 %v429
        %v486 = vunpack.c.l.b16 %v430
        %v487 = vunpack.c.l.b16 %v431
        %v488 = vunpack.c.l.b16 %v432
        %v489 = vunpack.c.l.b16 %v433
        %v490 = vunpack.c.l.b16 %v434
        %v491 = vunpack.c.l.b16 %v435
        %v492 = vunpack.c.l.b16 %v436
        %v493 = vunpack.c.l.b16 %v437
        %v494 = vunpack.c.l.b16 %v438
        %v495 = vunpack.c.l.b16 %v439
        %v496 = vunpack.c.l.b16 %v440
        %v497 = vunpack.c.l.b16 %v441
        %v498 = vunpack.c.l.b16 %v442
        %v499 = vunpack.c.l.b16 %v443
        %v500 = vpack.c.b16 %v481, %v480
        %v501 = vpack.c.b16 %v483, %v482
        %v502 = vpack.c.b16 %v485, %v484
        %v503 = vpack.c.b16 %v487, %v486
        %v504 = vpack.c.b16 %v489, %v488
        %v505 = vpack.c.b16 %v491, %v490
        %v506 = vpack.c.b16 %v493, %v492
        %v507 = vpack.c.b16 %v495, %v494
        %v508 = vpack.c.b16 %v497, %v496
        %v509 = vpack.c.b16 %v499, %v498
        %vm520 = vcmask 261120
        %v522 = vsel %vm520, %v458, 0
        %524 = vmatprep.subr.bf16.mxu0 0
        %525 = vmatpush1.bf16.msra.mxu0 %v500
        %526 = vmatprep.subr.bf16.mxu0 0
        %527 = vmatpush1.bf16.msra.mxu0 %v501
        %528 = vmatprep.subr.bf16.mxu0 0
        %529 = vmatpush1.bf16.msra.mxu0 %v502
        %530 = vmatprep.subr.bf16.mxu0 0
        %531 = vmatpush1.bf16.msra.mxu0 %v503
        %532 = vmatprep.subr.bf16.mxu0 0
        %533 = vmatpush1.bf16.msra.mxu0 %v504
        %534 = vmatprep.subr.bf16.mxu0 0
        %535 = vmatpush1.bf16.msra.mxu0 %v505
        %536 = vmatprep.subr.bf16.mxu0 0
        %537 = vmatpush1.bf16.msra.mxu0 %v506
        %538 = vmatprep.subr.bf16.mxu0 0
        %539 = vmatpush1.bf16.msra.mxu0 %v507
        %540 = vmatprep.subr.bf16.mxu0 0
        %541 = vmatpush1.bf16.msra.mxu0 %v508
        %542 = vmatprep.subr.bf16.mxu0 0
        %543 = vmatpush1.bf16.msra.mxu0 %v509
        %544 = vmatprep.subr.bf16.mxu0 0
        %545 = vmatpush1.bf16.msra.mxu0 0
        %546 = vmatprep.subr.bf16.mxu0 0
        %547 = vmatpush1.bf16.msra.mxu0 0
        %548 = vmatprep.subr.bf16.mxu0 0
        %549 = vmatpush1.bf16.msra.mxu0 0
        %550 = vmatprep.subr.bf16.mxu0 0
        %551 = vmatpush1.bf16.msra.mxu0 0
        %552 = vmatprep.subr.bf16.mxu0 0
        %553 = vmatpush1.bf16.msra.mxu0 0
        %554 = vmatprep.subr.bf16.mxu0 0
        %555 = vmatpush1.bf16.msra.mxu0 0
        %556 = vmatprep.mubr.bf16.mxu0 %v522
        %557 = vmatmul.mubr.bf16.gmra.mrb[0].mxu0 %v457
        %v558 = vpop.f32.mrb[0].mxu0
        %v559 = vadd.f32 %v449, %v558
        %v560 = vpop.f32.mrb[0].mxu0
        %v561 = vpop.f32.mrb[0].mxu0
        %v562 = vadd.f32 %v449, %v561
        %v563 = vpop.f32.mrb[0].mxu0
        %564 = vdwg.mxu0
        %565 = vadd.xlane.f32.xlu0 %v559
        %v566 = vpop.xlane.xlu0 %565
        %567 = vadd.xlane.f32.xlu0 %v562
        %v568 = vpop.xlane.xlu0 %567
        %v569 = vrcp.pop 128.0
        %v570 = vmul.f32 %v566, %v569
        %v571 = vmul.f32 %v568, %v569
        %v572 = vsub.f32 %v559, %v570
        %v573 = vsub.f32 %v562, %v571
        %v574 = vmul.f32 %v572, %v572
        %v575 = vmul.f32 %v573, %v573
        %576 = vadd.xlane.f32.xlu0 %v574
        %v577 = vpop.xlane.xlu0 %576
        %578 = vadd.xlane.f32.xlu0 %v575
        %v579 = vpop.xlane.xlu0 %578
        %v580 = vmul.f32 %v577, %v569
        %v581 = vmul.f32 %v579, %v569
        %v582 = vadd.f32 %v580, 1e-05
        %v583 = vadd.f32 %v581, 1e-05
        %v584 = vrsqrt.pop %v582
        %v585 = vrsqrt.pop %v583
        %v586 = vmul.f32 %v572, %v584
        %v587 = vmul.f32 %v573, %v585
        %v588 = vld [vmem:[%s3] sm:$0x1]
        %v589 = vlaneseq
        %v590 = vshrl.u32 %v589, 7
        %v591 = vsub.s32 0, %v590
        %v592 = vrot.slane %v588, %v591
        %v593 = vmul.f32 %v586, %v592
        %v594 = vmul.f32 %v587, %v592
        %v595 = vld [vmem:[%s4] sm:$0x1]
        %v596 = vlaneseq
        %v597 = vshrl.u32 %v596, 7
        %v598 = vsub.s32 0, %v597
        %v599 = vrot.slane %v595, %v598
        %v600 = vadd.f32 %v593, %v599
        %v601 = vadd.f32 %v594, %v599
        %v602 = vpack.c.bf16 %v601, %v600
        %v603 = vld [vmem:[#allocation2] sm:$0xff]
        %v604 = vld [vmem:[#allocation2 + $0x8] sm:$0xff]
        %v605 = vld [vmem:[#allocation2 + $0x10] sm:$0xff]
        %v606 = vld [vmem:[#allocation2 + $0x18] sm:$0xff]
        %v607 = vld [vmem:[#allocation2 + $0x20] sm:$0xff]
        %v608 = vld [vmem:[#allocation2 + $0x28] sm:$0xff]
        %v609 = vld [vmem:[#allocation2 + $0x30] sm:$0xff]
        %v610 = vld [vmem:[#allocation2 + $0x38] sm:$0xff]
        %v611 = vld [vmem:[#allocation2 + $0x40] sm:$0xff]
        %v612 = vld [vmem:[#allocation2 + $0x48] sm:$0xff]
        %v613 = vld [vmem:[#allocation2 + $0x50] sm:$0xff]
        %v614 = vld [vmem:[#allocation2 + $0x58] sm:$0xff]
        %v615 = vld [vmem:[#allocation2 + $0x60] sm:$0xff]
        %v616 = vld [vmem:[#allocation2 + $0x68] sm:$0xff]
        %v617 = vld [vmem:[#allocation2 + $0x70] sm:$0xff]
        %v618 = vld [vmem:[#allocation2 + $0x78] sm:$0xff]
        %v619 = vld [vmem:[#allocation2 + $0x80] sm:$0xff]
        %v620 = vld [vmem:[#allocation2 + $0x88] sm:$0xff]
        %v621 = vld [vmem:[#allocation2 + $0x90] sm:$0xff]
        %v622 = vld [vmem:[#allocation2 + $0x98] sm:$0xff]
        %v623 = vld [vmem:[#allocation2 + $0xa0] sm:$0xff]
        %v624 = vld [vmem:[#allocation2 + $0xa8] sm:$0xff]
        %v625 = vld [vmem:[#allocation2 + $0xb0] sm:$0xff]
        %v626 = vld [vmem:[#allocation2 + $0xb8] sm:$0xff]
        %v627 = vld [vmem:[#allocation2 + $0xc0] sm:$0xff]
        %v628 = vld [vmem:[#allocation2 + $0xc8] sm:$0xff]
        %v629 = vld [vmem:[#allocation2 + $0xd0] sm:$0xff]
        %v630 = vld [vmem:[#allocation2 + $0xd8] sm:$0xff]
        %v631 = vld [vmem:[#allocation2 + $0xe0] sm:$0xff]
        %v632 = vld [vmem:[#allocation2 + $0xe8] sm:$0xff]
        %v633 = vld [vmem:[#allocation2 + $0xf0] sm:$0xff]
        %v634 = vld [vmem:[#allocation2 + $0xf8] sm:$0xff]
        %v635 = vld [vmem:[%s6] ss:$2 sm:$0xf]
        %v637 = vlaneseq
        %v638 = vshrl.u32 %v637, 7
        %v639 = vsub.s32 0, %v638
        %v640 = vrot.slane %v635, %v639
        %v641 = vlaneseq
        %v642 = vshrl.u32 %v641, 7
        %v643 = vsub.s32 1, %v642
        %v644 = vrot.slane %v635, %v643
        %v645 = vlaneseq
        %v646 = vshrl.u32 %v645, 7
        %v647 = vsub.s32 2, %v646
        %v648 = vrot.slane %v635, %v647
        %v649 = vlaneseq
        %v650 = vshrl.u32 %v649, 7
        %v651 = vsub.s32 3, %v650
        %v652 = vrot.slane %v635, %v651
        %v689 = vunpack.c.l.b16 %v603
        %v690 = vunpack.c.h.b16 %v603
        %v691 = vunpack.c.l.b16 %v604
        %v692 = vunpack.c.h.b16 %v604
        %v693 = vunpack.c.l.b16 %v605
        %v694 = vunpack.c.h.b16 %v605
        %v695 = vunpack.c.l.b16 %v606
        %v696 = vunpack.c.h.b16 %v606
        %v697 = vunpack.c.l.b16 %v607
        %v698 = vunpack.c.h.b16 %v607
        %v699 = vunpack.c.l.b16 %v608
        %v700 = vunpack.c.h.b16 %v608
        %v701 = vunpack.c.l.b16 %v609
        %v702 = vunpack.c.h.b16 %v609
        %v703 = vunpack.c.l.b16 %v610
        %v704 = vunpack.c.h.b16 %v610
        %v705 = vunpack.c.l.b16 %v611
        %v706 = vunpack.c.h.b16 %v611
        %v707 = vunpack.c.l.b16 %v612
        %v708 = vunpack.c.h.b16 %v612
        %v709 = vunpack.c.l.b16 %v613
        %v710 = vunpack.c.h.b16 %v613
        %v711 = vunpack.c.l.b16 %v614
        %v712 = vunpack.c.h.b16 %v614
        %v713 = vunpack.c.l.b16 %v615
        %v714 = vunpack.c.h.b16 %v615
        %v715 = vunpack.c.l.b16 %v616
        %v716 = vunpack.c.h.b16 %v616
        %v717 = vunpack.c.l.b16 %v617
        %v718 = vunpack.c.h.b16 %v617
        %v719 = vunpack.c.l.b16 %v618
        %v720 = vunpack.c.h.b16 %v618
        %v721 = vunpack.c.l.b16 %v619
        %v722 = vunpack.c.h.b16 %v619
        %v723 = vunpack.c.l.b16 %v620
        %v724 = vunpack.c.h.b16 %v620
        %v725 = vunpack.c.l.b16 %v621
        %v726 = vunpack.c.h.b16 %v621
        %v727 = vunpack.c.l.b16 %v622
        %v728 = vunpack.c.h.b16 %v622
        %v729 = vunpack.c.l.b16 %v623
        %v730 = vunpack.c.h.b16 %v623
        %v731 = vunpack.c.l.b16 %v624
        %v732 = vunpack.c.h.b16 %v624
        %v733 = vunpack.c.l.b16 %v625
        %v734 = vunpack.c.h.b16 %v625
        %v735 = vunpack.c.l.b16 %v626
        %v736 = vunpack.c.h.b16 %v626
        %v737 = vunpack.c.l.b16 %v627
        %v738 = vunpack.c.h.b16 %v627
        %v739 = vunpack.c.l.b16 %v628
        %v740 = vunpack.c.h.b16 %v628
        %v741 = vunpack.c.l.b16 %v629
        %v742 = vunpack.c.h.b16 %v629
        %v743 = vunpack.c.l.b16 %v630
        %v744 = vunpack.c.h.b16 %v630
        %v745 = vunpack.c.l.b16 %v631
        %v746 = vunpack.c.h.b16 %v631
        %v747 = vunpack.c.l.b16 %v632
        %v748 = vunpack.c.h.b16 %v632
        %v749 = vunpack.c.l.b16 %v633
        %v750 = vunpack.c.h.b16 %v633
        %v751 = vunpack.c.l.b16 %v634
        %v752 = vunpack.c.h.b16 %v634
        %v753 = vpack.c.b16 %v693, %v689
        %v754 = vpack.c.b16 %v694, %v690
        %v755 = vpack.c.b16 %v695, %v691
        %v756 = vpack.c.b16 %v696, %v692
        %v757 = vpack.c.b16 %v701, %v697
        %v758 = vpack.c.b16 %v702, %v698
        %v759 = vpack.c.b16 %v703, %v699
        %v760 = vpack.c.b16 %v704, %v700
        %v761 = vpack.c.b16 %v709, %v705
        %v762 = vpack.c.b16 %v710, %v706
        %v763 = vpack.c.b16 %v711, %v707
        %v764 = vpack.c.b16 %v712, %v708
        %v765 = vpack.c.b16 %v717, %v713
        %v766 = vpack.c.b16 %v718, %v714
        %v767 = vpack.c.b16 %v719, %v715
        %v768 = vpack.c.b16 %v720, %v716
        %v769 = vpack.c.b16 %v725, %v721
        %v770 = vpack.c.b16 %v726, %v722
        %v771 = vpack.c.b16 %v727, %v723
        %v772 = vpack.c.b16 %v728, %v724
        %v773 = vpack.c.b16 %v733, %v729
        %v774 = vpack.c.b16 %v734, %v730
        %v775 = vpack.c.b16 %v735, %v731
        %v776 = vpack.c.b16 %v736, %v732
        %v777 = vpack.c.b16 %v741, %v737
        %v778 = vpack.c.b16 %v742, %v738
        %v779 = vpack.c.b16 %v743, %v739
        %v780 = vpack.c.b16 %v744, %v740
        %v781 = vpack.c.b16 %v749, %v745
        %v782 = vpack.c.b16 %v750, %v746
        %v783 = vpack.c.b16 %v751, %v747
        %v784 = vpack.c.b16 %v752, %v748
        %817 = vmatprep.subr.bf16.mxu0 %v754
        %818 = vmatpush1.bf16.msra.mxu0 %v753
        %819 = vmatprep.subr.bf16.mxu0 %v758
        %820 = vmatpush1.bf16.msra.mxu0 %v757
        %821 = vmatprep.subr.bf16.mxu0 %v762
        %822 = vmatpush1.bf16.msra.mxu0 %v761
        %823 = vmatprep.subr.bf16.mxu0 %v766
        %824 = vmatpush1.bf16.msra.mxu0 %v765
        %825 = vmatprep.subr.bf16.mxu0 %v770
        %826 = vmatpush1.bf16.msra.mxu0 %v769
        %827 = vmatprep.subr.bf16.mxu0 %v774
        %828 = vmatpush1.bf16.msra.mxu0 %v773
        %829 = vmatprep.subr.bf16.mxu0 %v778
        %830 = vmatpush1.bf16.msra.mxu0 %v777
        %831 = vmatprep.subr.bf16.mxu0 %v782
        %832 = vmatpush1.bf16.msra.mxu0 %v781
        %833 = vmatprep.subr.bf16.mxu0 0
        %834 = vmatpush1.bf16.msra.mxu0 0
        %835 = vmatprep.subr.bf16.mxu0 0
        %836 = vmatpush1.bf16.msra.mxu0 0
        %837 = vmatprep.subr.bf16.mxu0 0
        %838 = vmatpush1.bf16.msra.mxu0 0
        %839 = vmatprep.subr.bf16.mxu0 0
        %840 = vmatpush1.bf16.msra.mxu0 0
        %841 = vmatprep.subr.bf16.mxu0 0
        %842 = vmatpush1.bf16.msra.mxu0 0
        %843 = vmatprep.subr.bf16.mxu0 0
        %844 = vmatpush1.bf16.msra.mxu0 0
        %845 = vmatprep.subr.bf16.mxu0 0
        %846 = vmatpush1.bf16.msra.mxu0 0
        %847 = vmatprep.subr.bf16.mxu0 0
        %848 = vmatpush1.bf16.msra.mxu0 0
        %849 = vmatprep.mubr.bf16.mxu0 0
        %850 = vmatmul.mubr.bf16.gmra.mrb[0].mxu0 %v602
        %v851 = vpop.f32.mrb[0].mxu0
        %v852 = vadd.f32 %v640, %v851
        %v853 = vpop.f32.mrb[0].mxu0
        %v854 = vadd.f32 %v644, %v853
        %v855 = vpop.f32.mrb[0].mxu0
        %v856 = vadd.f32 %v640, %v855
        %v857 = vpop.f32.mrb[0].mxu0
        %v858 = vadd.f32 %v644, %v857
        %859 = vdwg.mxu0
        %860 = vmatprep.subr.bf16.mxu0 %v756
        %861 = vmatpush1.bf16.msra.mxu0 %v755
        %862 = vmatprep.subr.bf16.mxu0 %v760
        %863 = vmatpush1.bf16.msra.mxu0 %v759
        %864 = vmatprep.subr.bf16.mxu0 %v764
        %865 = vmatpush1.bf16.msra.mxu0 %v763
        %866 = vmatprep.subr.bf16.mxu0 %v768
        %867 = vmatpush1.bf16.msra.mxu0 %v767
        %868 = vmatprep.subr.bf16.mxu0 %v772
        %869 = vmatpush1.bf16.msra.mxu0 %v771
        %870 = vmatprep.subr.bf16.mxu0 %v776
        %871 = vmatpush1.bf16.msra.mxu0 %v775
        %872 = vmatprep.subr.bf16.mxu0 %v780
        %873 = vmatpush1.bf16.msra.mxu0 %v779
        %874 = vmatprep.subr.bf16.mxu0 %v784
        %875 = vmatpush1.bf16.msra.mxu0 %v783
        %876 = vmatprep.subr.bf16.mxu0 0
        %877 = vmatpush1.bf16.msra.mxu0 0
        %878 = vmatprep.subr.bf16.mxu0 0
        %879 = vmatpush1.bf16.msra.mxu0 0
        %880 = vmatprep.subr.bf16.mxu0 0
        %881 = vmatpush1.bf16.msra.mxu0 0
        %882 = vmatprep.subr.bf16.mxu0 0
        %883 = vmatpush1.bf16.msra.mxu0 0
        %884 = vmatprep.subr.bf16.mxu0 0
        %885 = vmatpush1.bf16.msra.mxu0 0
        %886 = vmatprep.subr.bf16.mxu0 0
        %887 = vmatpush1.bf16.msra.mxu0 0
        %888 = vmatprep.subr.bf16.mxu0 0
        %889 = vmatpush1.bf16.msra.mxu0 0
        %890 = vmatprep.subr.bf16.mxu0 0
        %891 = vmatpush1.bf16.msra.mxu0 0
        %892 = vmatprep.mubr.bf16.mxu0 0
        %893 = vmatmul.mubr.bf16.gmra.mrb[0].mxu0 %v602
        %v894 = vpop.f32.mrb[0].mxu0
        %v895 = vadd.f32 %v648, %v894
        %v896 = vpop.f32.mrb[0].mxu0
        %v897 = vadd.f32 %v652, %v896
        %v898 = vpop.f32.mrb[0].mxu0
        %v899 = vadd.f32 %v648, %v898
        %v900 = vpop.f32.mrb[0].mxu0
        %v901 = vadd.f32 %v652, %v900
        %902 = vdwg.mxu0
        %v903 = vmax.f32 %v852, 0.0
        %v904 = vmax.f32 %v854, 0.0
        %v905 = vmax.f32 %v895, 0.0
        %v906 = vmax.f32 %v897, 0.0
        %v907 = vmax.f32 %v856, 0.0
        %v908 = vmax.f32 %v858, 0.0
        %v909 = vmax.f32 %v899, 0.0
        %v910 = vmax.f32 %v901, 0.0
        %v911 = vpack.c.bf16 %v907, %v903
        %v912 = vpack.c.bf16 %v908, %v904
        %v913 = vpack.c.bf16 %v909, %v905
        %v914 = vpack.c.bf16 %v910, %v906
        %v915 = vld [vmem:[#allocation5] sm:$0xf]
        %v916 = vld [vmem:[#allocation5 + $0x4] sm:$0xf]
        %v917 = vld [vmem:[#allocation5 + $0x8] sm:$0xf]
        %v918 = vld [vmem:[#allocation5 + $0xc] sm:$0xf]
        %v919 = vld [vmem:[#allocation5 + $0x10] sm:$0xf]
        %v920 = vld [vmem:[#allocation5 + $0x14] sm:$0xf]
        %v921 = vld [vmem:[#allocation5 + $0x18] sm:$0xf]
        %v922 = vld [vmem:[#allocation5 + $0x1c] sm:$0xf]
        %v923 = vld [vmem:[#allocation5 + $0x20] sm:$0xf]
        %v924 = vld [vmem:[#allocation5 + $0x24] sm:$0xf]
        %v925 = vld [vmem:[#allocation5 + $0x28] sm:$0xf]
        %v926 = vld [vmem:[#allocation5 + $0x2c] sm:$0xf]
        %v927 = vld [vmem:[#allocation5 + $0x30] sm:$0xf]
        %v928 = vld [vmem:[#allocation5 + $0x34] sm:$0xf]
        %v929 = vld [vmem:[#allocation5 + $0x38] sm:$0xf]
        %v930 = vld [vmem:[#allocation5 + $0x3c] sm:$0xf]
        %v931 = vld [vmem:[#allocation5 + $0x40] sm:$0xf]
        %v932 = vld [vmem:[#allocation5 + $0x44] sm:$0xf]
        %v933 = vld [vmem:[#allocation5 + $0x48] sm:$0xf]
        %v934 = vld [vmem:[#allocation5 + $0x4c] sm:$0xf]
        %v935 = vld [vmem:[#allocation5 + $0x50] sm:$0xf]
        %v936 = vld [vmem:[#allocation5 + $0x54] sm:$0xf]
        %v937 = vld [vmem:[#allocation5 + $0x58] sm:$0xf]
        %v938 = vld [vmem:[#allocation5 + $0x5c] sm:$0xf]
        %v939 = vld [vmem:[#allocation5 + $0x60] sm:$0xf]
        %v940 = vld [vmem:[#allocation5 + $0x64] sm:$0xf]
        %v941 = vld [vmem:[#allocation5 + $0x68] sm:$0xf]
        %v942 = vld [vmem:[#allocation5 + $0x6c] sm:$0xf]
        %v943 = vld [vmem:[#allocation5 + $0x70] sm:$0xf]
        %v944 = vld [vmem:[#allocation5 + $0x74] sm:$0xf]
        %v945 = vld [vmem:[#allocation5 + $0x78] sm:$0xf]
        %v946 = vld [vmem:[#allocation5 + $0x7c] sm:$0xf]
        %v947 = vld [vmem:[#allocation5 + $0x80] sm:$0xf]
        %v948 = vld [vmem:[#allocation5 + $0x84] sm:$0xf]
        %v949 = vld [vmem:[#allocation5 + $0x88] sm:$0xf]
        %v950 = vld [vmem:[#allocation5 + $0x8c] sm:$0xf]
        %v951 = vld [vmem:[#allocation5 + $0x90] sm:$0xf]
        %v952 = vld [vmem:[#allocation5 + $0x94] sm:$0xf]
        %v953 = vld [vmem:[#allocation5 + $0x98] sm:$0xf]
        %v954 = vld [vmem:[#allocation5 + $0x9c] sm:$0xf]
        %v955 = vld [vmem:[#allocation5 + $0xa0] sm:$0xf]
        %v956 = vld [vmem:[#allocation5 + $0xa4] sm:$0xf]
        %v957 = vld [vmem:[#allocation5 + $0xa8] sm:$0xf]
        %v958 = vld [vmem:[#allocation5 + $0xac] sm:$0xf]
        %v959 = vld [vmem:[#allocation5 + $0xb0] sm:$0xf]
        %v960 = vld [vmem:[#allocation5 + $0xb4] sm:$0xf]
        %v961 = vld [vmem:[#allocation5 + $0xb8] sm:$0xf]
        %v962 = vld [vmem:[#allocation5 + $0xbc] sm:$0xf]
        %v963 = vld [vmem:[#allocation5 + $0xc0] sm:$0xf]
        %v964 = vld [vmem:[#allocation5 + $0xc4] sm:$0xf]
        %v965 = vld [vmem:[#allocation5 + $0xc8] sm:$0xf]
        %v966 = vld [vmem:[#allocation5 + $0xcc] sm:$0xf]
        %v967 = vld [vmem:[#allocation5 + $0xd0] sm:$0xf]
        %v968 = vld [vmem:[#allocation5 + $0xd4] sm:$0xf]
        %v969 = vld [vmem:[#allocation5 + $0xd8] sm:$0xf]
        %v970 = vld [vmem:[#allocation5 + $0xdc] sm:$0xf]
        %v971 = vld [vmem:[#allocation5 + $0xe0] sm:$0xf]
        %v972 = vld [vmem:[#allocation5 + $0xe4] sm:$0xf]
        %v973 = vld [vmem:[#allocation5 + $0xe8] sm:$0xf]
        %v974 = vld [vmem:[#allocation5 + $0xec] sm:$0xf]
        %v975 = vld [vmem:[#allocation5 + $0xf0] sm:$0xf]
        %v976 = vld [vmem:[#allocation5 + $0xf4] sm:$0xf]
        %v977 = vld [vmem:[#allocation5 + $0xf8] sm:$0xf]
        %v978 = vld [vmem:[#allocation5 + $0xfc] sm:$0xf]
        %v979 = vld [vmem:[%s8] sm:$0x1]
        %v980 = vlaneseq
        %v981 = vshrl.u32 %v980, 7
        %v982 = vsub.s32 0, %v981
        %v983 = vrot.slane %v979, %v982
        %v1048 = vunpack.c.l.b16 %v915
        %v1049 = vunpack.c.l.b16 %v916
        %v1050 = vunpack.c.l.b16 %v917
        %v1051 = vunpack.c.l.b16 %v918
        %v1052 = vunpack.c.l.b16 %v919
        %v1053 = vunpack.c.l.b16 %v920
        %v1054 = vunpack.c.l.b16 %v921
        %v1055 = vunpack.c.l.b16 %v922
        %v1056 = vunpack.c.l.b16 %v923
        %v1057 = vunpack.c.l.b16 %v924
        %v1058 = vunpack.c.l.b16 %v925
        %v1059 = vunpack.c.l.b16 %v926
        %v1060 = vunpack.c.l.b16 %v927
        %v1061 = vunpack.c.l.b16 %v928
        %v1062 = vunpack.c.l.b16 %v929
        %v1063 = vunpack.c.l.b16 %v930
        %v1064 = vunpack.c.l.b16 %v931
        %v1065 = vunpack.c.l.b16 %v932
        %v1066 = vunpack.c.l.b16 %v933
        %v1067 = vunpack.c.l.b16 %v934
        %v1068 = vunpack.c.l.b16 %v935
        %v1069 = vunpack.c.l.b16 %v936
        %v1070 = vunpack.c.l.b16 %v937
        %v1071 = vunpack.c.l.b16 %v938
        %v1072 = vunpack.c.l.b16 %v939
        %v1073 = vunpack.c.l.b16 %v940
        %v1074 = vunpack.c.l.b16 %v941
        %v1075 = vunpack.c.l.b16 %v942
        %v1076 = vunpack.c.l.b16 %v943
        %v1077 = vunpack.c.l.b16 %v944
        %v1078 = vunpack.c.l.b16 %v945
        %v1079 = vunpack.c.l.b16 %v946
        %v1080 = vunpack.c.l.b16 %v947
        %v1081 = vunpack.c.l.b16 %v948
        %v1082 = vunpack.c.l.b16 %v949
        %v1083 = vunpack.c.l.b16 %v950
        %v1084 = vunpack.c.l.b16 %v951
        %v1085 = vunpack.c.l.b16 %v952
        %v1086 = vunpack.c.l.b16 %v953
        %v1087 = vunpack.c.l.b16 %v954
        %v1088 = vunpack.c.l.b16 %v955
        %v1089 = vunpack.c.l.b16 %v956
        %v1090 = vunpack.c.l.b16 %v957
        %v1091 = vunpack.c.l.b16 %v958
        %v1092 = vunpack.c.l.b16 %v959
        %v1093 = vunpack.c.l.b16 %v960
        %v1094 = vunpack.c.l.b16 %v961
        %v1095 = vunpack.c.l.b16 %v962
        %v1096 = vunpack.c.l.b16 %v963
        %v1097 = vunpack.c.l.b16 %v964
        %v1098 = vunpack.c.l.b16 %v965
        %v1099 = vunpack.c.l.b16 %v966
        %v1100 = vunpack.c.l.b16 %v967
        %v1101 = vunpack.c.l.b16 %v968
        %v1102 = vunpack.c.l.b16 %v969
        %v1103 = vunpack.c.l.b16 %v970
        %v1104 = vunpack.c.l.b16 %v971
        %v1105 = vunpack.c.l.b16 %v972
        %v1106 = vunpack.c.l.b16 %v973
        %v1107 = vunpack.c.l.b16 %v974
        %v1108 = vunpack.c.l.b16 %v975
        %v1109 = vunpack.c.l.b16 %v976
        %v1110 = vunpack.c.l.b16 %v977
        %v1111 = vunpack.c.l.b16 %v978
        %v1112 = vpack.c.b16 %v1049, %v1048
        %v1113 = vpack.c.b16 %v1051, %v1050
        %v1114 = vpack.c.b16 %v1053, %v1052
        %v1115 = vpack.c.b16 %v1055, %v1054
        %v1116 = vpack.c.b16 %v1057, %v1056
        %v1117 = vpack.c.b16 %v1059, %v1058
        %v1118 = vpack.c.b16 %v1061, %v1060
        %v1119 = vpack.c.b16 %v1063, %v1062
        %v1120 = vpack.c.b16 %v1065, %v1064
        %v1121 = vpack.c.b16 %v1067, %v1066
        %v1122 = vpack.c.b16 %v1069, %v1068
        %v1123 = vpack.c.b16 %v1071, %v1070
        %v1124 = vpack.c.b16 %v1073, %v1072
        %v1125 = vpack.c.b16 %v1075, %v1074
        %v1126 = vpack.c.b16 %v1077, %v1076
        %v1127 = vpack.c.b16 %v1079, %v1078
        %v1128 = vpack.c.b16 %v1081, %v1080
        %v1129 = vpack.c.b16 %v1083, %v1082
        %v1130 = vpack.c.b16 %v1085, %v1084
        %v1131 = vpack.c.b16 %v1087, %v1086
        %v1132 = vpack.c.b16 %v1089, %v1088
        %v1133 = vpack.c.b16 %v1091, %v1090
        %v1134 = vpack.c.b16 %v1093, %v1092
        %v1135 = vpack.c.b16 %v1095, %v1094
        %v1136 = vpack.c.b16 %v1097, %v1096
        %v1137 = vpack.c.b16 %v1099, %v1098
        %v1138 = vpack.c.b16 %v1101, %v1100
        %v1139 = vpack.c.b16 %v1103, %v1102
        %v1140 = vpack.c.b16 %v1105, %v1104
        %v1141 = vpack.c.b16 %v1107, %v1106
        %v1142 = vpack.c.b16 %v1109, %v1108
        %v1143 = vpack.c.b16 %v1111, %v1110
        %1176 = vmatprep.subr.bf16.mxu0 0
        %1177 = vmatpush1.bf16.msra.mxu0 %v1112
        %1178 = vmatprep.subr.bf16.mxu0 0
        %1179 = vmatpush1.bf16.msra.mxu0 %v1113
        %1180 = vmatprep.subr.bf16.mxu0 0
        %1181 = vmatpush1.bf16.msra.mxu0 %v1114
        %1182 = vmatprep.subr.bf16.mxu0 0
        %1183 = vmatpush1.bf16.msra.mxu0 %v1115
        %1184 = vmatprep.subr.bf16.mxu0 0
        %1185 = vmatpush1.bf16.msra.mxu0 %v1116
        %1186 = vmatprep.subr.bf16.mxu0 0
        %1187 = vmatpush1.bf16.msra.mxu0 %v1117
        %1188 = vmatprep.subr.bf16.mxu0 0
        %1189 = vmatpush1.bf16.msra.mxu0 %v1118
        %1190 = vmatprep.subr.bf16.mxu0 0
        %1191 = vmatpush1.bf16.msra.mxu0 %v1119
        %1192 = vmatprep.subr.bf16.mxu0 0
        %1193 = vmatpush1.bf16.msra.mxu0 %v1120
        %1194 = vmatprep.subr.bf16.mxu0 0
        %1195 = vmatpush1.bf16.msra.mxu0 %v1121
        %1196 = vmatprep.subr.bf16.mxu0 0
        %1197 = vmatpush1.bf16.msra.mxu0 %v1122
        %1198 = vmatprep.subr.bf16.mxu0 0
        %1199 = vmatpush1.bf16.msra.mxu0 %v1123
        %1200 = vmatprep.subr.bf16.mxu0 0
        %1201 = vmatpush1.bf16.msra.mxu0 %v1124
        %1202 = vmatprep.subr.bf16.mxu0 0
        %1203 = vmatpush1.bf16.msra.mxu0 %v1125
        %1204 = vmatprep.subr.bf16.mxu0 0
        %1205 = vmatpush1.bf16.msra.mxu0 %v1126
        %1206 = vmatprep.subr.bf16.mxu0 0
        %1207 = vmatpush1.bf16.msra.mxu0 %v1127
        %1208 = vmatprep.mubr.bf16.mxu0 %v912
        %1209 = vmatmul.mubr.bf16.gmra.mrb[0].mxu0 %v911
        %v1210 = vpop.f32.mrb[0].mxu0
        %v1211 = vadd.f32 %v983, %v1210
        %v1212 = vpop.f32.mrb[0].mxu0
        %v1213 = vpop.f32.mrb[0].mxu0
        %v1214 = vadd.f32 %v983, %v1213
        %v1215 = vpop.f32.mrb[0].mxu0
        %1216 = vdwg.mxu0
        %1217 = vmatprep.subr.bf16.mxu0 0
        %1218 = vmatpush1.bf16.msra.mxu0 %v1128
        %1219 = vmatprep.subr.bf16.mxu0 0
        %1220 = vmatpush1.bf16.msra.mxu0 %v1129
        %1221 = vmatprep.subr.bf16.mxu0 0
        %1222 = vmatpush1.bf16.msra.mxu0 %v1130
        %1223 = vmatprep.subr.bf16.mxu0 0
        %1224 = vmatpush1.bf16.msra.mxu0 %v1131
        %1225 = vmatprep.subr.bf16.mxu0 0
        %1226 = vmatpush1.bf16.msra.mxu0 %v1132
        %1227 = vmatprep.subr.bf16.mxu0 0
        %1228 = vmatpush1.bf16.msra.mxu0 %v1133
        %1229 = vmatprep.subr.bf16.mxu0 0
        %1230 = vmatpush1.bf16.msra.mxu0 %v1134
        %1231 = vmatprep.subr.bf16.mxu0 0
        %1232 = vmatpush1.bf16.msra.mxu0 %v1135
        %1233 = vmatprep.subr.bf16.mxu0 0
        %1234 = vmatpush1.bf16.msra.mxu0 %v1136
        %1235 = vmatprep.subr.bf16.mxu0 0
        %1236 = vmatpush1.bf16.msra.mxu0 %v1137
        %1237 = vmatprep.subr.bf16.mxu0 0
        %1238 = vmatpush1.bf16.msra.mxu0 %v1138
        %1239 = vmatprep.subr.bf16.mxu0 0
        %1240 = vmatpush1.bf16.msra.mxu0 %v1139
        %1241 = vmatprep.subr.bf16.mxu0 0
        %1242 = vmatpush1.bf16.msra.mxu0 %v1140
        %1243 = vmatprep.subr.bf16.mxu0 0
        %1244 = vmatpush1.bf16.msra.mxu0 %v1141
        %1245 = vmatprep.subr.bf16.mxu0 0
        %1246 = vmatpush1.bf16.msra.mxu0 %v1142
        %1247 = vmatprep.subr.bf16.mxu0 0
        %1248 = vmatpush1.bf16.msra.mxu0 %v1143
        %1249 = vmatprep.mubr.bf16.mxu0 %v914
        %1250 = vmatmul.mubr.bf16.gmra.mrb[0].mxu0 %v913
        %v1251 = vpop.f32.mrb[0].mxu0
        %v1252 = vadd.f32 %v1211, %v1251
        %v1253 = vpop.f32.mrb[0].mxu0
        %v1254 = vpop.f32.mrb[0].mxu0
        %v1255 = vadd.f32 %v1214, %v1254
        %v1256 = vpop.f32.mrb[0].mxu0
        %1257 = vdwg.mxu0
        %v1258 = vadd.f32 %v559, %v1252
        %v1259 = vadd.f32 %v562, %v1255
        %1260 = vadd.xlane.f32.xlu0 %v1258
        %v1261 = vpop.xlane.xlu0 %1260
        %1262 = vadd.xlane.f32.xlu0 %v1259
        %v1263 = vpop.xlane.xlu0 %1262
        %v1264 = vmul.f32 %v1261, %v569
        %v1265 = vmul.f32 %v1263, %v569
        %v1266 = vsub.f32 %v1258, %v1264
        %v1267 = vsub.f32 %v1259, %v1265
        %v1268 = vmul.f32 %v1266, %v1266
        %v1269 = vmul.f32 %v1267, %v1267
        %1270 = vadd.xlane.f32.xlu0 %v1268
        %v1271 = vpop.xlane.xlu0 %1270
        %1272 = vadd.xlane.f32.xlu0 %v1269
        %v1273 = vpop.xlane.xlu0 %1272
        %v1274 = vmul.f32 %v1271, %v569
        %v1275 = vmul.f32 %v1273, %v569
        %v1276 = vadd.f32 %v1274, 1e-05
        %v1277 = vadd.f32 %v1275, 1e-05
        %v1278 = vrsqrt.pop %v1276
        %v1279 = vrsqrt.pop %v1277
        %v1280 = vmul.f32 %v1266, %v1278
        %v1281 = vmul.f32 %v1267, %v1279
        %v1282 = vld [vmem:[%s3 + $0x1] sm:$0x1]
        %v1283 = vlaneseq
        %v1284 = vshrl.u32 %v1283, 7
        %v1285 = vsub.s32 0, %v1284
        %v1286 = vrot.slane %v1282, %v1285
        %v1287 = vmul.f32 %v1280, %v1286
        %v1288 = vmul.f32 %v1281, %v1286
        %v1289 = vld [vmem:[%s4 + $0x1] sm:$0x1]
        %v1290 = vlaneseq
        %v1291 = vshrl.u32 %v1290, 7
        %v1292 = vsub.s32 0, %v1291
        %v1293 = vrot.slane %v1289, %v1292
        %v1294 = vadd.f32 %v1287, %v1293
        %v1295 = vadd.f32 %v1288, %v1293
        %v1296 = vpack.c.bf16 %v1295, %v1294
        %s1297 = scalar_lea.vmem [#allocation2], 256
        %v1298 = vld [vmem:[%s1297] sm:$0xff]
        %v1299 = vld [vmem:[%s1297 + $0x8] sm:$0xff]
        %v1300 = vld [vmem:[%s1297 + $0x10] sm:$0xff]
        %v1301 = vld [vmem:[%s1297 + $0x18] sm:$0xff]
        %v1302 = vld [vmem:[%s1297 + $0x20] sm:$0xff]
        %v1303 = vld [vmem:[%s1297 + $0x28] sm:$0xff]
        %v1304 = vld [vmem:[%s1297 + $0x30] sm:$0xff]
        %v1305 = vld [vmem:[%s1297 + $0x38] sm:$0xff]
        %v1306 = vld [vmem:[%s1297 + $0x40] sm:$0xff]
        %v1307 = vld [vmem:[%s1297 + $0x48] sm:$0xff]
        %v1308 = vld [vmem:[%s1297 + $0x50] sm:$0xff]
        %v1309 = vld [vmem:[%s1297 + $0x58] sm:$0xff]
        %v1310 = vld [vmem:[%s1297 + $0x60] sm:$0xff]
        %v1311 = vld [vmem:[%s1297 + $0x68] sm:$0xff]
        %v1312 = vld [vmem:[%s1297 + $0x70] sm:$0xff]
        %v1313 = vld [vmem:[%s1297 + $0x78] sm:$0xff]
        %v1314 = vld [vmem:[%s1297 + $0x80] sm:$0xff]
        %v1315 = vld [vmem:[%s1297 + $0x88] sm:$0xff]
        %v1316 = vld [vmem:[%s1297 + $0x90] sm:$0xff]
        %v1317 = vld [vmem:[%s1297 + $0x98] sm:$0xff]
        %v1318 = vld [vmem:[%s1297 + $0xa0] sm:$0xff]
        %v1319 = vld [vmem:[%s1297 + $0xa8] sm:$0xff]
        %v1320 = vld [vmem:[%s1297 + $0xb0] sm:$0xff]
        %v1321 = vld [vmem:[%s1297 + $0xb8] sm:$0xff]
        %v1322 = vld [vmem:[%s1297 + $0xc0] sm:$0xff]
        %v1323 = vld [vmem:[%s1297 + $0xc8] sm:$0xff]
        %v1324 = vld [vmem:[%s1297 + $0xd0] sm:$0xff]
        %v1325 = vld [vmem:[%s1297 + $0xd8] sm:$0xff]
        %v1326 = vld [vmem:[%s1297 + $0xe0] sm:$0xff]
        %v1327 = vld [vmem:[%s1297 + $0xe8] sm:$0xff]
        %v1328 = vld [vmem:[%s1297 + $0xf0] sm:$0xff]
        %v1329 = vld [vmem:[%s1297 + $0xf8] sm:$0xff]
        %s1330 = scalar_lea.vmem %s6, 1
        %v1331 = vld [vmem:[%s1330] ss:$2 sm:$0xf]
        %v1333 = vlaneseq
        %v1334 = vshrl.u32 %v1333, 7
        %v1335 = vsub.s32 0, %v1334
        %v1336 = vrot.slane %v1331, %v1335
        %v1337 = vlaneseq
        %v1338 = vshrl.u32 %v1337, 7
        %v1339 = vsub.s32 1, %v1338
        %v1340 = vrot.slane %v1331, %v1339
        %v1341 = vlaneseq
        %v1342 = vshrl.u32 %v1341, 7
        %v1343 = vsub.s32 2, %v1342
        %v1344 = vrot.slane %v1331, %v1343
        %v1345 = vlaneseq
        %v1346 = vshrl.u32 %v1345, 7
        %v1347 = vsub.s32 3, %v1346
        %v1348 = vrot.slane %v1331, %v1347
        %v1385 = vunpack.c.l.b16 %v1298
        %v1386 = vunpack.c.h.b16 %v1298
        %v1387 = vunpack.c.l.b16 %v1299
        %v1388 = vunpack.c.h.b16 %v1299
        %v1389 = vunpack.c.l.b16 %v1300
        %v1390 = vunpack.c.h.b16 %v1300
        %v1391 = vunpack.c.l.b16 %v1301
        %v1392 = vunpack.c.h.b16 %v1301
        %v1393 = vunpack.c.l.b16 %v1302
        %v1394 = vunpack.c.h.b16 %v1302
        %v1395 = vunpack.c.l.b16 %v1303
        %v1396 = vunpack.c.h.b16 %v1303
        %v1397 = vunpack.c.l.b16 %v1304
        %v1398 = vunpack.c.h.b16 %v1304
        %v1399 = vunpack.c.l.b16 %v1305
        %v1400 = vunpack.c.h.b16 %v1305
        %v1401 = vunpack.c.l.b16 %v1306
        %v1402 = vunpack.c.h.b16 %v1306
        %v1403 = vunpack.c.l.b16 %v1307
        %v1404 = vunpack.c.h.b16 %v1307
        %v1405 = vunpack.c.l.b16 %v1308
        %v1406 = vunpack.c.h.b16 %v1308
        %v1407 = vunpack.c.l.b16 %v1309
        %v1408 = vunpack.c.h.b16 %v1309
        %v1409 = vunpack.c.l.b16 %v1310
        %v1410 = vunpack.c.h.b16 %v1310
        %v1411 = vunpack.c.l.b16 %v1311
        %v1412 = vunpack.c.h.b16 %v1311
        %v1413 = vunpack.c.l.b16 %v1312
        %v1414 = vunpack.c.h.b16 %v1312
        %v1415 = vunpack.c.l.b16 %v1313
        %v1416 = vunpack.c.h.b16 %v1313
        %v1417 = vunpack.c.l.b16 %v1314
        %v1418 = vunpack.c.h.b16 %v1314
        %v1419 = vunpack.c.l.b16 %v1315
        %v1420 = vunpack.c.h.b16 %v1315
        %v1421 = vunpack.c.l.b16 %v1316
        %v1422 = vunpack.c.h.b16 %v1316
        %v1423 = vunpack.c.l.b16 %v1317
        %v1424 = vunpack.c.h.b16 %v1317
        %v1425 = vunpack.c.l.b16 %v1318
        %v1426 = vunpack.c.h.b16 %v1318
        %v1427 = vunpack.c.l.b16 %v1319
        %v1428 = vunpack.c.h.b16 %v1319
        %v1429 = vunpack.c.l.b16 %v1320
        %v1430 = vunpack.c.h.b16 %v1320
        %v1431 = vunpack.c.l.b16 %v1321
        %v1432 = vunpack.c.h.b16 %v1321
        %v1433 = vunpack.c.l.b16 %v1322
        %v1434 = vunpack.c.h.b16 %v1322
        %v1435 = vunpack.c.l.b16 %v1323
        %v1436 = vunpack.c.h.b16 %v1323
        %v1437 = vunpack.c.l.b16 %v1324
        %v1438 = vunpack.c.h.b16 %v1324
        %v1439 = vunpack.c.l.b16 %v1325
        %v1440 = vunpack.c.h.b16 %v1325
        %v1441 = vunpack.c.l.b16 %v1326
        %v1442 = vunpack.c.h.b16 %v1326
        %v1443 = vunpack.c.l.b16 %v1327
        %v1444 = vunpack.c.h.b16 %v1327
        %v1445 = vunpack.c.l.b16 %v1328
        %v1446 = vunpack.c.h.b16 %v1328
        %v1447 = vunpack.c.l.b16 %v1329
        %v1448 = vunpack.c.h.b16 %v1329
        %v1449 = vpack.c.b16 %v1389, %v1385
        %v1450 = vpack.c.b16 %v1390, %v1386
        %v1451 = vpack.c.b16 %v1391, %v1387
        %v1452 = vpack.c.b16 %v1392, %v1388
        %v1453 = vpack.c.b16 %v1397, %v1393
        %v1454 = vpack.c.b16 %v1398, %v1394
        %v1455 = vpack.c.b16 %v1399, %v1395
        %v1456 = vpack.c.b16 %v1400, %v1396
        %v1457 = vpack.c.b16 %v1405, %v1401
        %v1458 = vpack.c.b16 %v1406, %v1402
        %v1459 = vpack.c.b16 %v1407, %v1403
        %v1460 = vpack.c.b16 %v1408, %v1404
        %v1461 = vpack.c.b16 %v1413, %v1409
        %v1462 = vpack.c.b16 %v1414, %v1410
        %v1463 = vpack.c.b16 %v1415, %v1411
        %v1464 = vpack.c.b16 %v1416, %v1412
        %v1465 = vpack.c.b16 %v1421, %v1417
        %v1466 = vpack.c.b16 %v1422, %v1418
        %v1467 = vpack.c.b16 %v1423, %v1419
        %v1468 = vpack.c.b16 %v1424, %v1420
        %v1469 = vpack.c.b16 %v1429, %v1425
        %v1470 = vpack.c.b16 %v1430, %v1426
        %v1471 = vpack.c.b16 %v1431, %v1427
        %v1472 = vpack.c.b16 %v1432, %v1428
        %v1473 = vpack.c.b16 %v1437, %v1433
        %v1474 = vpack.c.b16 %v1438, %v1434
        %v1475 = vpack.c.b16 %v1439, %v1435
        %v1476 = vpack.c.b16 %v1440, %v1436
        %v1477 = vpack.c.b16 %v1445, %v1441
        %v1478 = vpack.c.b16 %v1446, %v1442
        %v1479 = vpack.c.b16 %v1447, %v1443
        %v1480 = vpack.c.b16 %v1448, %v1444
        %1513 = vmatprep.subr.bf16.mxu0 %v1450
        %1514 = vmatpush1.bf16.msra.mxu0 %v1449
        %1515 = vmatprep.subr.bf16.mxu0 %v1454
        %1516 = vmatpush1.bf16.msra.mxu0 %v1453
        %1517 = vmatprep.subr.bf16.mxu0 %v1458
        %1518 = vmatpush1.bf16.msra.mxu0 %v1457
        %1519 = vmatprep.subr.bf16.mxu0 %v1462
        %1520 = vmatpush1.bf16.msra.mxu0 %v1461
        %1521 = vmatprep.subr.bf16.mxu0 %v1466
        %1522 = vmatpush1.bf16.msra.mxu0 %v1465
        %1523 = vmatprep.subr.bf16.mxu0 %v1470
        %1524 = vmatpush1.bf16.msra.mxu0 %v1469
        %1525 = vmatprep.subr.bf16.mxu0 %v1474
        %1526 = vmatpush1.bf16.msra.mxu0 %v1473
        %1527 = vmatprep.subr.bf16.mxu0 %v1478
        %1528 = vmatpush1.bf16.msra.mxu0 %v1477
        %1529 = vmatprep.subr.bf16.mxu0 0
        %1530 = vmatpush1.bf16.msra.mxu0 0
        %1531 = vmatprep.subr.bf16.mxu0 0
        %1532 = vmatpush1.bf16.msra.mxu0 0
        %1533 = vmatprep.subr.bf16.mxu0 0
        %1534 = vmatpush1.bf16.msra.mxu0 0
        %1535 = vmatprep.subr.bf16.mxu0 0
        %1536 = vmatpush1.bf16.msra.mxu0 0
        %1537 = vmatprep.subr.bf16.mxu0 0
        %1538 = vmatpush1.bf16.msra.mxu0 0
        %1539 = vmatprep.subr.bf16.mxu0 0
        %1540 = vmatpush1.bf16.msra.mxu0 0
        %1541 = vmatprep.subr.bf16.mxu0 0
        %1542 = vmatpush1.bf16.msra.mxu0 0
        %1543 = vmatprep.subr.bf16.mxu0 0
        %1544 = vmatpush1.bf16.msra.mxu0 0
        %1545 = vmatprep.mubr.bf16.mxu0 0
        %1546 = vmatmul.mubr.bf16.gmra.mrb[0].mxu0 %v1296
        %v1547 = vpop.f32.mrb[0].mxu0
        %v1548 = vadd.f32 %v1336, %v1547
        %v1549 = vpop.f32.mrb[0].mxu0
        %v1550 = vadd.f32 %v1340, %v1549
        %v1551 = vpop.f32.mrb[0].mxu0
        %v1552 = vadd.f32 %v1336, %v1551
        %v1553 = vpop.f32.mrb[0].mxu0
        %v1554 = vadd.f32 %v1340, %v1553
        %1555 = vdwg.mxu0
        %1556 = vmatprep.subr.bf16.mxu0 %v1452
        %1557 = vmatpush1.bf16.msra.mxu0 %v1451
        %1558 = vmatprep.subr.bf16.mxu0 %v1456
        %1559 = vmatpush1.bf16.msra.mxu0 %v1455
        %1560 = vmatprep.subr.bf16.mxu0 %v1460
        %1561 = vmatpush1.bf16.msra.mxu0 %v1459
        %1562 = vmatprep.subr.bf16.mxu0 %v1464
        %1563 = vmatpush1.bf16.msra.mxu0 %v1463
        %1564 = vmatprep.subr.bf16.mxu0 %v1468
        %1565 = vmatpush1.bf16.msra.mxu0 %v1467
        %1566 = vmatprep.subr.bf16.mxu0 %v1472
        %1567 = vmatpush1.bf16.msra.mxu0 %v1471
        %1568 = vmatprep.subr.bf16.mxu0 %v1476
        %1569 = vmatpush1.bf16.msra.mxu0 %v1475
        %1570 = vmatprep.subr.bf16.mxu0 %v1480
        %1571 = vmatpush1.bf16.msra.mxu0 %v1479
        %1572 = vmatprep.subr.bf16.mxu0 0
        %1573 = vmatpush1.bf16.msra.mxu0 0
        %1574 = vmatprep.subr.bf16.mxu0 0
        %1575 = vmatpush1.bf16.msra.mxu0 0
        %1576 = vmatprep.subr.bf16.mxu0 0
        %1577 = vmatpush1.bf16.msra.mxu0 0
        %1578 = vmatprep.subr.bf16.mxu0 0
        %1579 = vmatpush1.bf16.msra.mxu0 0
        %1580 = vmatprep.subr.bf16.mxu0 0
        %1581 = vmatpush1.bf16.msra.mxu0 0
        %1582 = vmatprep.subr.bf16.mxu0 0
        %1583 = vmatpush1.bf16.msra.mxu0 0
        %1584 = vmatprep.subr.bf16.mxu0 0
        %1585 = vmatpush1.bf16.msra.mxu0 0
        %1586 = vmatprep.subr.bf16.mxu0 0
        %1587 = vmatpush1.bf16.msra.mxu0 0
        %1588 = vmatprep.mubr.bf16.mxu0 0
        %1589 = vmatmul.mubr.bf16.gmra.mrb[0].mxu0 %v1296
        %v1590 = vpop.f32.mrb[0].mxu0
        %v1591 = vadd.f32 %v1344, %v1590
        %v1592 = vpop.f32.mrb[0].mxu0
        %v1593 = vadd.f32 %v1348, %v1592
        %v1594 = vpop.f32.mrb[0].mxu0
        %v1595 = vadd.f32 %v1344, %v1594
        %v1596 = vpop.f32.mrb[0].mxu0
        %v1597 = vadd.f32 %v1348, %v1596
        %1598 = vdwg.mxu0
        %v1599 = vmax.f32 %v1548, 0.0
        %v1600 = vmax.f32 %v1550, 0.0
        %v1601 = vmax.f32 %v1591, 0.0
        %v1602 = vmax.f32 %v1593, 0.0
        %v1603 = vmax.f32 %v1552, 0.0
        %v1604 = vmax.f32 %v1554, 0.0
        %v1605 = vmax.f32 %v1595, 0.0
        %v1606 = vmax.f32 %v1597, 0.0
        %v1607 = vpack.c.bf16 %v1603, %v1599
        %v1608 = vpack.c.bf16 %v1604, %v1600
        %v1609 = vpack.c.bf16 %v1605, %v1601
        %v1610 = vpack.c.bf16 %v1606, %v1602
        %s1611 = scalar_lea.vmem [#allocation5], 256
        %v1612 = vld [vmem:[%s1611] sm:$0xf]
        %v1613 = vld [vmem:[%s1611 + $0x4] sm:$0xf]
        %v1614 = vld [vmem:[%s1611 + $0x8] sm:$0xf]
        %v1615 = vld [vmem:[%s1611 + $0xc] sm:$0xf]
        %v1616 = vld [vmem:[%s1611 + $0x10] sm:$0xf]
        %v1617 = vld [vmem:[%s1611 + $0x14] sm:$0xf]
        %v1618 = vld [vmem:[%s1611 + $0x18] sm:$0xf]
        %v1619 = vld [vmem:[%s1611 + $0x1c] sm:$0xf]
        %v1620 = vld [vmem:[%s1611 + $0x20] sm:$0xf]
        %v1621 = vld [vmem:[%s1611 + $0x24] sm:$0xf]
        %v1622 = vld [vmem:[%s1611 + $0x28] sm:$0xf]
        %v1623 = vld [vmem:[%s1611 + $0x2c] sm:$0xf]
        %v1624 = vld [vmem:[%s1611 + $0x30] sm:$0xf]
        %v1625 = vld [vmem:[%s1611 + $0x34] sm:$0xf]
        %v1626 = vld [vmem:[%s1611 + $0x38] sm:$0xf]
        %v1627 = vld [vmem:[%s1611 + $0x3c] sm:$0xf]
        %v1628 = vld [vmem:[%s1611 + $0x40] sm:$0xf]
        %v1629 = vld [vmem:[%s1611 + $0x44] sm:$0xf]
        %v1630 = vld [vmem:[%s1611 + $0x48] sm:$0xf]
        %v1631 = vld [vmem:[%s1611 + $0x4c] sm:$0xf]
        %v1632 = vld [vmem:[%s1611 + $0x50] sm:$0xf]
        %v1633 = vld [vmem:[%s1611 + $0x54] sm:$0xf]
        %v1634 = vld [vmem:[%s1611 + $0x58] sm:$0xf]
        %v1635 = vld [vmem:[%s1611 + $0x5c] sm:$0xf]
        %v1636 = vld [vmem:[%s1611 + $0x60] sm:$0xf]
        %v1637 = vld [vmem:[%s1611 + $0x64] sm:$0xf]
        %v1638 = vld [vmem:[%s1611 + $0x68] sm:$0xf]
        %v1639 = vld [vmem:[%s1611 + $0x6c] sm:$0xf]
        %v1640 = vld [vmem:[%s1611 + $0x70] sm:$0xf]
        %v1641 = vld [vmem:[%s1611 + $0x74] sm:$0xf]
        %v1642 = vld [vmem:[%s1611 + $0x78] sm:$0xf]
        %v1643 = vld [vmem:[%s1611 + $0x7c] sm:$0xf]
        %v1644 = vld [vmem:[%s1611 + $0x80] sm:$0xf]
        %v1645 = vld [vmem:[%s1611 + $0x84] sm:$0xf]
        %v1646 = vld [vmem:[%s1611 + $0x88] sm:$0xf]
        %v1647 = vld [vmem:[%s1611 + $0x8c] sm:$0xf]
        %v1648 = vld [vmem:[%s1611 + $0x90] sm:$0xf]
        %v1649 = vld [vmem:[%s1611 + $0x94] sm:$0xf]
        %v1650 = vld [vmem:[%s1611 + $0x98] sm:$0xf]
        %v1651 = vld [vmem:[%s1611 + $0x9c] sm:$0xf]
        %v1652 = vld [vmem:[%s1611 + $0xa0] sm:$0xf]
        %v1653 = vld [vmem:[%s1611 + $0xa4] sm:$0xf]
        %v1654 = vld [vmem:[%s1611 + $0xa8] sm:$0xf]
        %v1655 = vld [vmem:[%s1611 + $0xac] sm:$0xf]
        %v1656 = vld [vmem:[%s1611 + $0xb0] sm:$0xf]
        %v1657 = vld [vmem:[%s1611 + $0xb4] sm:$0xf]
        %v1658 = vld [vmem:[%s1611 + $0xb8] sm:$0xf]
        %v1659 = vld [vmem:[%s1611 + $0xbc] sm:$0xf]
        %v1660 = vld [vmem:[%s1611 + $0xc0] sm:$0xf]
        %v1661 = vld [vmem:[%s1611 + $0xc4] sm:$0xf]
        %v1662 = vld [vmem:[%s1611 + $0xc8] sm:$0xf]
        %v1663 = vld [vmem:[%s1611 + $0xcc] sm:$0xf]
        %v1664 = vld [vmem:[%s1611 + $0xd0] sm:$0xf]
        %v1665 = vld [vmem:[%s1611 + $0xd4] sm:$0xf]
        %v1666 = vld [vmem:[%s1611 + $0xd8] sm:$0xf]
        %v1667 = vld [vmem:[%s1611 + $0xdc] sm:$0xf]
        %v1668 = vld [vmem:[%s1611 + $0xe0] sm:$0xf]
        %v1669 = vld [vmem:[%s1611 + $0xe4] sm:$0xf]
        %v1670 = vld [vmem:[%s1611 + $0xe8] sm:$0xf]
        %v1671 = vld [vmem:[%s1611 + $0xec] sm:$0xf]
        %v1672 = vld [vmem:[%s1611 + $0xf0] sm:$0xf]
        %v1673 = vld [vmem:[%s1611 + $0xf4] sm:$0xf]
        %v1674 = vld [vmem:[%s1611 + $0xf8] sm:$0xf]
        %v1675 = vld [vmem:[%s1611 + $0xfc] sm:$0xf]
        %v1676 = vld [vmem:[%s8 + $0x1] sm:$0x1]
        %v1677 = vlaneseq
        %v1678 = vshrl.u32 %v1677, 7
        %v1679 = vsub.s32 0, %v1678
        %v1680 = vrot.slane %v1676, %v1679
        %v1745 = vunpack.c.l.b16 %v1612
        %v1746 = vunpack.c.l.b16 %v1613
        %v1747 = vunpack.c.l.b16 %v1614
        %v1748 = vunpack.c.l.b16 %v1615
        %v1749 = vunpack.c.l.b16 %v1616
        %v1750 = vunpack.c.l.b16 %v1617
        %v1751 = vunpack.c.l.b16 %v1618
        %v1752 = vunpack.c.l.b16 %v1619
        %v1753 = vunpack.c.l.b16 %v1620
        %v1754 = vunpack.c.l.b16 %v1621
        %v1755 = vunpack.c.l.b16 %v1622
        %v1756 = vunpack.c.l.b16 %v1623
        %v1757 = vunpack.c.l.b16 %v1624
        %v1758 = vunpack.c.l.b16 %v1625
        %v1759 = vunpack.c.l.b16 %v1626
        %v1760 = vunpack.c.l.b16 %v1627
        %v1761 = vunpack.c.l.b16 %v1628
        %v1762 = vunpack.c.l.b16 %v1629
        %v1763 = vunpack.c.l.b16 %v1630
        %v1764 = vunpack.c.l.b16 %v1631
        %v1765 = vunpack.c.l.b16 %v1632
        %v1766 = vunpack.c.l.b16 %v1633
        %v1767 = vunpack.c.l.b16 %v1634
        %v1768 = vunpack.c.l.b16 %v1635
        %v1769 = vunpack.c.l.b16 %v1636
        %v1770 = vunpack.c.l.b16 %v1637
        %v1771 = vunpack.c.l.b16 %v1638
        %v1772 = vunpack.c.l.b16 %v1639
        %v1773 = vunpack.c.l.b16 %v1640
        %v1774 = vunpack.c.l.b16 %v1641
        %v1775 = vunpack.c.l.b16 %v1642
        %v1776 = vunpack.c.l.b16 %v1643
        %v1777 = vunpack.c.l.b16 %v1644
        %v1778 = vunpack.c.l.b16 %v1645
        %v1779 = vunpack.c.l.b16 %v1646
        %v1780 = vunpack.c.l.b16 %v1647
        %v1781 = vunpack.c.l.b16 %v1648
        %v1782 = vunpack.c.l.b16 %v1649
        %v1783 = vunpack.c.l.b16 %v1650
        %v1784 = vunpack.c.l.b16 %v1651
        %v1785 = vunpack.c.l.b16 %v1652
        %v1786 = vunpack.c.l.b16 %v1653
        %v1787 = vunpack.c.l.b16 %v1654
        %v1788 = vunpack.c.l.b16 %v1655
        %v1789 = vunpack.c.l.b16 %v1656
        %v1790 = vunpack.c.l.b16 %v1657
        %v1791 = vunpack.c.l.b16 %v1658
        %v1792 = vunpack.c.l.b16 %v1659
        %v1793 = vunpack.c.l.b16 %v1660
        %v1794 = vunpack.c.l.b16 %v1661
        %v1795 = vunpack.c.l.b16 %v1662
        %v1796 = vunpack.c.l.b16 %v1663
        %v1797 = vunpack.c.l.b16 %v1664
        %v1798 = vunpack.c.l.b16 %v1665
        %v1799 = vunpack.c.l.b16 %v1666
        %v1800 = vunpack.c.l.b16 %v1667
        %v1801 = vunpack.c.l.b16 %v1668
        %v1802 = vunpack.c.l.b16 %v1669
        %v1803 = vunpack.c.l.b16 %v1670
        %v1804 = vunpack.c.l.b16 %v1671
        %v1805 = vunpack.c.l.b16 %v1672
        %v1806 = vunpack.c.l.b16 %v1673
        %v1807 = vunpack.c.l.b16 %v1674
        %v1808 = vunpack.c.l.b16 %v1675
        %v1809 = vpack.c.b16 %v1746, %v1745
        %v1810 = vpack.c.b16 %v1748, %v1747
        %v1811 = vpack.c.b16 %v1750, %v1749
        %v1812 = vpack.c.b16 %v1752, %v1751
        %v1813 = vpack.c.b16 %v1754, %v1753
        %v1814 = vpack.c.b16 %v1756, %v1755
        %v1815 = vpack.c.b16 %v1758, %v1757
        %v1816 = vpack.c.b16 %v1760, %v1759
        %v1817 = vpack.c.b16 %v1762, %v1761
        %v1818 = vpack.c.b16 %v1764, %v1763
        %v1819 = vpack.c.b16 %v1766, %v1765
        %v1820 = vpack.c.b16 %v1768, %v1767
        %v1821 = vpack.c.b16 %v1770, %v1769
        %v1822 = vpack.c.b16 %v1772, %v1771
        %v1823 = vpack.c.b16 %v1774, %v1773
        %v1824 = vpack.c.b16 %v1776, %v1775
        %v1825 = vpack.c.b16 %v1778, %v1777
        %v1826 = vpack.c.b16 %v1780, %v1779
        %v1827 = vpack.c.b16 %v1782, %v1781
        %v1828 = vpack.c.b16 %v1784, %v1783
        %v1829 = vpack.c.b16 %v1786, %v1785
        %v1830 = vpack.c.b16 %v1788, %v1787
        %v1831 = vpack.c.b16 %v1790, %v1789
        %v1832 = vpack.c.b16 %v1792, %v1791
        %v1833 = vpack.c.b16 %v1794, %v1793
        %v1834 = vpack.c.b16 %v1796, %v1795
        %v1835 = vpack.c.b16 %v1798, %v1797
        %v1836 = vpack.c.b16 %v1800, %v1799
        %v1837 = vpack.c.b16 %v1802, %v1801
        %v1838 = vpack.c.b16 %v1804, %v1803
        %v1839 = vpack.c.b16 %v1806, %v1805
        %v1840 = vpack.c.b16 %v1808, %v1807
        %1873 = vmatprep.subr.bf16.mxu0 0
        %1874 = vmatpush1.bf16.msra.mxu0 %v1809
        %1875 = vmatprep.subr.bf16.mxu0 0
        %1876 = vmatpush1.bf16.msra.mxu0 %v1810
        %1877 = vmatprep.subr.bf16.mxu0 0
        %1878 = vmatpush1.bf16.msra.mxu0 %v1811
        %1879 = vmatprep.subr.bf16.mxu0 0
        %1880 = vmatpush1.bf16.msra.mxu0 %v1812
        %1881 = vmatprep.subr.bf16.mxu0 0
        %1882 = vmatpush1.bf16.msra.mxu0 %v1813
        %1883 = vmatprep.subr.bf16.mxu0 0
        %1884 = vmatpush1.bf16.msra.mxu0 %v1814
        %1885 = vmatprep.subr.bf16.mxu0 0
        %1886 = vmatpush1.bf16.msra.mxu0 %v1815
        %1887 = vmatprep.subr.bf16.mxu0 0
        %1888 = vmatpush1.bf16.msra.mxu0 %v1816
        %1889 = vmatprep.subr.bf16.mxu0 0
        %1890 = vmatpush1.bf16.msra.mxu0 %v1817
        %1891 = vmatprep.subr.bf16.mxu0 0
        %1892 = vmatpush1.bf16.msra.mxu0 %v1818
        %1893 = vmatprep.subr.bf16.mxu0 0
        %1894 = vmatpush1.bf16.msra.mxu0 %v1819
        %1895 = vmatprep.subr.bf16.mxu0 0
        %1896 = vmatpush1.bf16.msra.mxu0 %v1820
        %1897 = vmatprep.subr.bf16.mxu0 0
        %1898 = vmatpush1.bf16.msra.mxu0 %v1821
        %1899 = vmatprep.subr.bf16.mxu0 0
        %1900 = vmatpush1.bf16.msra.mxu0 %v1822
        %1901 = vmatprep.subr.bf16.mxu0 0
        %1902 = vmatpush1.bf16.msra.mxu0 %v1823
        %1903 = vmatprep.subr.bf16.mxu0 0
        %1904 = vmatpush1.bf16.msra.mxu0 %v1824
        %1905 = vmatprep.mubr.bf16.mxu0 %v1608
        %1906 = vmatmul.mubr.bf16.gmra.mrb[0].mxu0 %v1607
        %v1907 = vpop.f32.mrb[0].mxu0
        %v1908 = vadd.f32 %v1680, %v1907
        %v1909 = vpop.f32.mrb[0].mxu0
        %v1910 = vpop.f32.mrb[0].mxu0
        %v1911 = vadd.f32 %v1680, %v1910
        %v1912 = vpop.f32.mrb[0].mxu0
        %1913 = vdwg.mxu0
        %1914 = vmatprep.subr.bf16.mxu0 0
        %1915 = vmatpush1.bf16.msra.mxu0 %v1825
        %1916 = vmatprep.subr.bf16.mxu0 0
        %1917 = vmatpush1.bf16.msra.mxu0 %v1826
        %1918 = vmatprep.subr.bf16.mxu0 0
        %1919 = vmatpush1.bf16.msra.mxu0 %v1827
        %1920 = vmatprep.subr.bf16.mxu0 0
        %1921 = vmatpush1.bf16.msra.mxu0 %v1828
        %1922 = vmatprep.subr.bf16.mxu0 0
        %1923 = vmatpush1.bf16.msra.mxu0 %v1829
        %1924 = vmatprep.subr.bf16.mxu0 0
        %1925 = vmatpush1.bf16.msra.mxu0 %v1830
        %1926 = vmatprep.subr.bf16.mxu0 0
        %1927 = vmatpush1.bf16.msra.mxu0 %v1831
        %1928 = vmatprep.subr.bf16.mxu0 0
        %1929 = vmatpush1.bf16.msra.mxu0 %v1832
        %1930 = vmatprep.subr.bf16.mxu0 0
        %1931 = vmatpush1.bf16.msra.mxu0 %v1833
        %1932 = vmatprep.subr.bf16.mxu0 0
        %1933 = vmatpush1.bf16.msra.mxu0 %v1834
        %1934 = vmatprep.subr.bf16.mxu0 0
        %1935 = vmatpush1.bf16.msra.mxu0 %v1835
        %1936 = vmatprep.subr.bf16.mxu0 0
        %1937 = vmatpush1.bf16.msra.mxu0 %v1836
        %1938 = vmatprep.subr.bf16.mxu0 0
        %1939 = vmatpush1.bf16.msra.mxu0 %v1837
        %1940 = vmatprep.subr.bf16.mxu0 0
        %1941 = vmatpush1.bf16.msra.mxu0 %v1838
        %1942 = vmatprep.subr.bf16.mxu0 0
        %1943 = vmatpush1.bf16.msra.mxu0 %v1839
        %1944 = vmatprep.subr.bf16.mxu0 0
        %1945 = vmatpush1.bf16.msra.mxu0 %v1840
        %1946 = vmatprep.mubr.bf16.mxu0 %v1610
        %1947 = vmatmul.mubr.bf16.gmra.mrb[0].mxu0 %v1609
        %v1948 = vpop.f32.mrb[0].mxu0
        %v1949 = vadd.f32 %v1908, %v1948
        %v1950 = vpop.f32.mrb[0].mxu0
        %v1951 = vpop.f32.mrb[0].mxu0
        %v1952 = vadd.f32 %v1911, %v1951
        %v1953 = vpop.f32.mrb[0].mxu0
        %1954 = vdwg.mxu0
        %v1955 = vadd.f32 %v1258, %v1949
        %v1956 = vadd.f32 %v1259, %v1952
        %v1957 = vmax.f32 %v1955, 0.0
        %v1958 = vmax.f32 %v1956, 0.0
        %v1959 = vpack.c.bf16 %v1958, %v1957
        %v1960 = vld [vmem:[%s9] sm:$0xf]
        %v1961 = vld [vmem:[%s9 + $0x4] sm:$0xf]
        %v1962 = vld [vmem:[%s9 + $0x8] sm:$0xf]
        %v1963 = vld [vmem:[%s9 + $0xc] sm:$0xf]
        %v1964 = vld [vmem:[%s9 + $0x10] sm:$0xf]
        %v1965 = vld [vmem:[%s9 + $0x14] sm:$0xf]
        %v1966 = vld [vmem:[%s9 + $0x18] sm:$0xf]
        %v1967 = vld [vmem:[%s9 + $0x1c] sm:$0xf]
        %v1968 = vld [vmem:[%s9 + $0x20] sm:$0xf]
        %v1969 = vld [vmem:[%s9 + $0x24] sm:$0xf]
        %v1970 = vld [vmem:[%s9 + $0x28] sm:$0xf]
        %v1971 = vld [vmem:[%s9 + $0x2c] sm:$0xf]
        %v1972 = vld [vmem:[%s9 + $0x30] sm:$0xf]
        %v1973 = vld [vmem:[%s9 + $0x34] sm:$0xf]
        %v1974 = vld [vmem:[%s9 + $0x38] sm:$0xf]
        %v1975 = vld [vmem:[%s9 + $0x3c] sm:$0xf]
        %v1976 = vld [vmem:[%s10] sm:$0x1]
        %v1978 = vlaneseq
        %v1979 = vshrl.u32 %v1978, 7
        %v1980 = vsub.s32 0, %v1979
        %v1981 = vrot.slane %v1976, %v1980
        %v1999 = vunpack.c.l.b16 %v1960
        %v2000 = vunpack.c.l.b16 %v1961
        %v2001 = vunpack.c.l.b16 %v1962
        %v2002 = vunpack.c.l.b16 %v1963
        %v2003 = vunpack.c.l.b16 %v1964
        %v2004 = vunpack.c.l.b16 %v1965
        %v2005 = vunpack.c.l.b16 %v1966
        %v2006 = vunpack.c.l.b16 %v1967
        %v2007 = vunpack.c.l.b16 %v1968
        %v2008 = vunpack.c.l.b16 %v1969
        %v2009 = vunpack.c.l.b16 %v1970
        %v2010 = vunpack.c.l.b16 %v1971
        %v2011 = vunpack.c.l.b16 %v1972
        %v2012 = vunpack.c.l.b16 %v1973
        %v2013 = vunpack.c.l.b16 %v1974
        %v2014 = vunpack.c.l.b16 %v1975
        %v2015 = vpack.c.b16 %v2000, %v1999
        %v2016 = vpack.c.b16 %v2002, %v2001
        %v2017 = vpack.c.b16 %v2004, %v2003
        %v2018 = vpack.c.b16 %v2006, %v2005
        %v2019 = vpack.c.b16 %v2008, %v2007
        %v2020 = vpack.c.b16 %v2010, %v2009
        %v2021 = vpack.c.b16 %v2012, %v2011
        %v2022 = vpack.c.b16 %v2014, %v2013
        %2031 = vmatprep.subr.bf16.mxu0 0
        %2032 = vmatpush1.bf16.msra.mxu0 %v2015
        %2033 = vmatprep.subr.bf16.mxu0 0
        %2034 = vmatpush1.bf16.msra.mxu0 %v2016
        %2035 = vmatprep.subr.bf16.mxu0 0
        %2036 = vmatpush1.bf16.msra.mxu0 %v2017
        %2037 = vmatprep.subr.bf16.mxu0 0
        %2038 = vmatpush1.bf16.msra.mxu0 %v2018
        %2039 = vmatprep.subr.bf16.mxu0 0
        %2040 = vmatpush1.bf16.msra.mxu0 %v2019
        %2041 = vmatprep.subr.bf16.mxu0 0
        %2042 = vmatpush1.bf16.msra.mxu0 %v2020
        %2043 = vmatprep.subr.bf16.mxu0 0
        %2044 = vmatpush1.bf16.msra.mxu0 %v2021
        %2045 = vmatprep.subr.bf16.mxu0 0
        %2046 = vmatpush1.bf16.msra.mxu0 %v2022
        %2047 = vmatprep.subr.bf16.mxu0 0
        %2048 = vmatpush1.bf16.msra.mxu0 0
        %2049 = vmatprep.subr.bf16.mxu0 0
        %2050 = vmatpush1.bf16.msra.mxu0 0
        %2051 = vmatprep.subr.bf16.mxu0 0
        %2052 = vmatpush1.bf16.msra.mxu0 0
        %2053 = vmatprep.subr.bf16.mxu0 0
        %2054 = vmatpush1.bf16.msra.mxu0 0
        %2055 = vmatprep.subr.bf16.mxu0 0
        %2056 = vmatpush1.bf16.msra.mxu0 0
        %2057 = vmatprep.subr.bf16.mxu0 0
        %2058 = vmatpush1.bf16.msra.mxu0 0
        %2059 = vmatprep.subr.bf16.mxu0 0
        %2060 = vmatpush1.bf16.msra.mxu0 0
        %2061 = vmatprep.subr.bf16.mxu0 0
        %2062 = vmatpush1.bf16.msra.mxu0 0
        %2063 = vmatprep.mubr.bf16.mxu0 0
        %2064 = vmatmul.mubr.bf16.gmra.mrb[0].mxu0 %v1959
        %v2065 = vpop.f32.mrb[0].mxu0
        %v2066 = vadd.f32 %v1981, %v2065
        %v2067 = vpop.f32.mrb[0].mxu0
        %v2068 = vpop.f32.mrb[0].mxu0
        %v2069 = vadd.f32 %v1981, %v2068
        %v2070 = vpop.f32.mrb[0].mxu0
        %2071 = vdwg.mxu0
        %2072 = vst [vmem:[%s412] sm:$0xff] %v2066
        %2073 = vst [vmem:[%s412 + $0x8] sm:$0xff] %v2069
        %s2074 = sand.u32 %s271, 1
        %s2075 = scalar_lea.sflag [#allocation4], %s2074
        %s2076 = sand.u32 %s271, 1
        %s2077 = smul.addr %s2076, 16
        %s2078 = scalar_lea.vmem [#allocation7], %s2077
        // Predicated region
        $region73: #{mlp_resnet_forward.1} parent=63 // pred_check
          %p2079 = pneg %p281
        $region74: #{mlp_resnet_forward.1} parent=63 // pred_check_branch
          %2081 = sbr.rel (%p2079) target = $region76
        $region75: #{mlp_resnet_forward.1} parent=63 // pred_region
          %s2082 = smul.u32 2, %s27
          %s2084 = ssub.s32 256, 256
          %2085 = vsyncadd %s2075, %s2084
          %s2086 = smul.addr %s2082, 128
          %s2087 = scalar_lea.hbm %s11, %s2086
          %s2088 = sshll.u32 %s2078, 4
          %s2089 = int_to_ptr.vmem [resolvable:$true] %s2088
          %2094 = dma.vmem_to_hbm [thread:$0]  %s2089, 256, %s2087, %s2075, 128, 128, 8
        $region76: #{mlp_resnet_forward.1} parent=63 // pred_fallthru
          _
      $region64: #{mlp_resnet_forward.1} parent=5 // pred_fallthru
        _
      %p2095 = scmp.le.s32.totalorder 2, %s22
      // Predicated region
      $region77: #{mlp_resnet_forward.1} parent=5 // pred_check
        %p2096 = pneg %p2095
      $region78: #{mlp_resnet_forward.1} parent=5 // pred_check_branch
        %2098 = sbr.rel (%p2096) target = $region80
      $region79: #{mlp_resnet_forward.1} parent=5 // pred_region
        %s2099 = ssub.s32 %s22, 2
        // Predicated region
        $region81: #{mlp_resnet_forward.1} parent=79 // pred_check
          %p2100 = pneg %p287
        $region82: #{mlp_resnet_forward.1} parent=79 // pred_check_branch
          %2102 = sbr.rel (%p2100) target = $region84
        $region83: #{mlp_resnet_forward.1} parent=79 // pred_region
          %s2103 = sand.u32 %s272, 1
          %s2104 = scalar_lea.sflag [#allocation4], %s2103
          %s2105 = sand.u32 %s272, 1
          %s2106 = smul.addr %s2105, 16
          %s2107 = scalar_lea.vmem [#allocation7], %s2106
          %2108 = dma.done %s2104, 256
        $region84: #{mlp_resnet_forward.1} parent=79 // pred_fallthru
          _
      $region80: #{mlp_resnet_forward.1} parent=5 // pred_fallthru
        _
    $region6: #{mlp_resnet_forward.1} parent=1 // loop_footer
      %s26 = sadd.s32 1, %s22
    $region7: #{mlp_resnet_forward.1} parent=1 // loop_footer_branch
      %21 = sbr.rel target = $region3
    $region8: #{mlp_resnet_forward.1} parent=1 // loop_exit
      _
    %2109 = vsyncpa [#allocation3], 1
    %s2110 = scalar_lea.sflag [#allocation3], 1
    %2111 = vsyncpa %s2110, 1
    %2112 = vsyncpa [#allocation6], 1
    %2113 = vsyncpa [#allocation4], 1
    %s2114 = scalar_lea.sflag [#allocation4], 1
    %2115 = vsyncpa %s2114, 1

</llo_original>
